<compile_context>
chip_gen: v6e
topology: v6e:2x2x1
jax: 0.10.0
libtpu: 0.0.40
codegen_flags: <defaults>
</compile_context>

<pallas_src>
import functools

import jax
import jax.numpy as jnp
import numpy as np
from jax.experimental import pallas as pl
from jax.experimental.pallas import tpu as pltpu


def _pt_bilinear_weights(in_size, out_size):
    """(out_size, in_size) 1-D interpolation matrix matching
    torch.nn.functional.interpolate(mode='bilinear', align_corners=False)."""
    scale = in_size / out_size
    dst = np.arange(out_size)
    src = np.maximum((dst + 0.5) * scale - 0.5, 0.0)
    i0 = np.minimum(np.floor(src).astype(np.int64), in_size - 1)
    i1 = np.minimum(i0 + 1, in_size - 1)
    w1 = src - i0
    m = np.zeros((out_size, in_size), np.float64)
    m[dst, i0] += 1.0 - w1
    m[dst, i1] += w1
    return m


def _msf_kernel(x_ref, wconv_ref, rmat_ref, w4_ref, o_ref, slab_ref,
                *, NC, NO, width, offs):
    """Whole batch in one step (batch folded onto sublanes).

    x_ref    : (N*C, LF)              zero-padded samples, spatial flat on lanes
    wconv_ref: (3*N*O, 27*N*C + 1)    block-diag (branch,sample) conv weights, bias last col
    rmat_ref : (3, width, OH*OW)      bf16 crop + bilinear-resize matrices (exact in bf16)
    w4_ref   : (N*O, 3*N*O + 1)       sample-block-diag 1x1 fusion weights, bias last col
    o_ref    : (N*O, OH*OW)           lane-dense output slab (single unmasked store)
    slab_ref : (27*N*C, width)        VMEM im2col staging scratch
    """
    x = x_ref[...]                                                   # (N*C, LF) f32
    # --- im2col: one lane-shifted slice per (branch, tap); covers both samples at once.
    for t, off in enumerate(offs):
        slab_ref[t * NC:(t + 1) * NC, :] = x[:, off:off + width]
    # --- all 3 dilated convs for all samples as ONE MXU contraction (+ bias, ReLU).
    w = wconv_ref[...]
    conv = jnp.dot(w[:, :-1], slab_ref[...],
                   preferred_element_type=jnp.float32) + w[:, -1:]
    conv = jnp.maximum(conv, 0.0)                                    # (3*N*O, width)
    # --- fused crop + PyTorch bilinear resize: one lane-dense matmul per branch.
    res = [jnp.dot(conv[b * NO:(b + 1) * NO, :],
                   rmat_ref[b].astype(jnp.float32),                  # bf16 storage is exact
                   preferred_element_type=jnp.float32)
           for b in range(3)]
    fused = jnp.concatenate(res, axis=0)                             # (3*N*O, OH*OW)
    # --- 1x1 fusion conv for both samples as ONE dot (+ bias).
    w4 = w4_ref[...]
    out = jnp.dot(w4[:, :-1], fused,
                  preferred_element_type=jnp.float32) + w4[:, -1:]
    o_ref[...] = out.astype(o_ref.dtype)                             # (8, 256) unmasked


def multi_scale_fusion(x, conv1, conv2, conv3, conv4, *, dilations=(1, 2, 4), padding=2):
    """Forward pass of MultiScaleFusion.

    x            : (N, C, H, W)
    conv1..conv3 : (weight (O, C, 3, 3), bias (O,))  dilated 3x3 convs, stride 1, padding 2
    conv4        : (weight (O, 3*O, 1, 1), bias (O,)) 1x1 fusion conv
    """
    N, C, H, W = x.shape
    O, _, K, _ = conv1[0].shape
    assert conv4[0].shape[1] == 3 * O, "fusion conv expects 3*O input channels (inp == outp)"

    Hp, Wp = H + 2 * padding, W + 2 * padding
    rows = tuple(Hp - (K - 1) * d for d in dilations)     # per-branch output heights
    cols = tuple(Wp - (K - 1) * d for d in dilations)     # per-branch output widths
    OH, OW = rows[1], cols[1]                             # module output = branch-2 size
    Rmax = max(rows)
    width = Rmax * Wp                                     # common conv-evaluation width
    taps = K * K

    # Largest lane index read by any dilated tap at the common width; pad x past it so
    # every (garbage) over-read stays inside the sample's own zero-padded lane block.
    max_off = max((K - 1) * d * (Wp + 1) for d in dilations)
    LF = int(pl.cdiv(max(Hp * Wp, max_off + width), 128)) * 128

    # ---- input slab: zero-pad, flatten spatial onto lanes, fold batch onto sublanes ----
    xp = jnp.pad(x.astype(jnp.float32),
                 ((0, 0), (0, 0), (padding, padding), (padding, padding)))
    xf = jnp.pad(xp.reshape(N, C, Hp * Wp), ((0, 0), (0, 0), (0, LF - Hp * Wp)))
    x_slab = xf.reshape(N * C, LF)

    # static tap lane-offsets, (branch, tap)-major — must match the weight-column packing
    offs = tuple((kh * Wp + kw) * d for d in dilations for kh in range(K) for kw in range(K))

    # ---- conv weights: block-diagonal over (branch, sample); bias folded as last column -
    eyeN = jnp.eye(N, dtype=jnp.float32)
    Wfull = jnp.zeros((3 * N * O, 3 * taps * N * C), jnp.float32)
    bias_rows = []
    for b, (w, bv) in enumerate((conv1, conv2, conv3)):
        wt = jnp.transpose(w.astype(jnp.float32), (2, 3, 1, 0))      # (K, K, C, O)
        wt = jnp.transpose(wt, (0, 1, 3, 2)).reshape(taps, O, C)     # [t, o, c]
        blk = jnp.einsum('nm,toc->notmc', eyeN, wt).reshape(N * O, taps * N * C)
        Wfull = Wfull.at[b * N * O:(b + 1) * N * O,
                         b * taps * N * C:(b + 1) * taps * N * C].set(blk)
        bias_rows.append(jnp.tile(bv.astype(jnp.float32), N))
    wconv_aug = jnp.concatenate([Wfull, jnp.concatenate(bias_rows)[:, None]], axis=1)

    # ---- 1x1 fusion conv: block-diagonal over samples; bias as last column -------------
    w4, b4 = conv4
    w4r = w4.reshape(O, 3, O).astype(jnp.float32)                    # [o, branch, c]
    w4_blk = jnp.einsum('nm,obc->nobmc', eyeN, w4r).reshape(N * O, 3 * N * O)
    w4_aug = jnp.concatenate([w4_blk, jnp.tile(b4.astype(jnp.float32), N)[:, None]], axis=1)

    # ---- crop + bilinear (align_corners=False) Kronecker matrices, bf16 (exact) --------
    def _resample_matrix(rb, cb):
        wr = np.zeros((OH, Rmax), np.float64)
        wr[:, :rb] = _pt_bilinear_weights(rb, OH)                    # rows >= rb cropped
        wc = np.zeros((OW, Wp), np.float64)
        wc[:, :cb] = _pt_bilinear_weights(cb, OW)                    # cols >= cb cropped
        return np.kron(wr, wc).T                                     # (width, OH*OW)

    rmats = jnp.asarray(np.stack([_resample_matrix(rows[i], cols[i]) for i in range(3)]),
                        jnp.bfloat16)

    kernel = functools.partial(_msf_kernel, NC=N * C, NO=N * O, width=width, offs=offs)

    flops = 2 * ((3 * N * O) * (3 * taps * N * C) * width
                 + 3 * (N * O) * width * (OH * OW)
                 + (N * O) * (3 * N * O) * (OH * OW))
    bytes_accessed = (int(x_slab.size) * 4 + int(wconv_aug.size) * 4 + int(rmats.size) * 2
                      + int(w4_aug.size) * 4 + N * O * OH * OW * 4)

    out_flat = pl.pallas_call(
        kernel,
        out_shape=jax.ShapeDtypeStruct((N * O, OH * OW), x.dtype),
        grid=(1,),                                        # whole batch in one fat step
        in_specs=[
            pl.BlockSpec((N * C, LF), lambda i: (0, 0)),              # input slab
            pl.BlockSpec(wconv_aug.shape, lambda i: (0, 0)),          # conv weights+bias
            pl.BlockSpec(rmats.shape, lambda i: (0, 0, 0)),           # bf16 resize matrices
            pl.BlockSpec(w4_aug.shape, lambda i: (0, 0)),             # fusion weights+bias
        ],
        out_specs=pl.BlockSpec((N * O, OH * OW), lambda i: (0, 0)),
        scratch_shapes=[pltpu.VMEM((3 * taps * N * C, width), jnp.float32)],  # im2col slab
        compiler_params=pltpu.CompilerParams(dimension_semantics=("arbitrary",)),
        cost_estimate=pl.CostEstimate(flops=int(flops), transcendentals=0,
                                      bytes_accessed=int(bytes_accessed)),
    )(x_slab, wconv_aug, rmats, w4_aug)

    return out_flat.reshape(N, O, OH, OW)


def _reference(x, conv1, conv2, conv3, conv4, *, dilations=(1, 2, 4), padding=2):
    """Pure-JAX reference matching the PyTorch module."""
    pad_cfg = [(padding, padding), (padding, padding)]
    hi = jax.lax.Precision.HIGHEST
    branches = []
    for (w, b), d in zip((conv1, conv2, conv3), dilations):
        y = jax.lax.conv_general_dilated(
            x, w, window_strides=(1, 1), padding=pad_cfg, rhs_dilation=(d, d),
            dimension_numbers=("NCHW", "OIHW", "NCHW"), precision=hi)
        branches.append(jnp.maximum(y + b[None, :, None, None], 0.0))
    oh, ow = branches[1].shape[2], branches[1].shape[3]

    def resize(t):
        wr = jnp.asarray(_pt_bilinear_weights(t.shape[2], oh), jnp.float32)
        wc = jnp.asarray(_pt_bilinear_weights(t.shape[3], ow), jnp.float32)
        t = jnp.einsum('oy,ncyx->ncox', wr, t, precision=hi)
        return jnp.einsum('px,ncox->ncop', wc, t, precision=hi)

    fused = jnp.concatenate([resize(branches[0]), branches[1], resize(branches[2])], axis=1)
    w4, b4 = conv4
    z = jax.lax.conv_general_dilated(
        fused, w4, (1, 1), [(0, 0), (0, 0)],
        dimension_numbers=("NCHW", "OIHW", "NCHW"), precision=hi)
    return z + b4[None, :, None, None]


if __name__ == "__main__":
    # MultiScaleFusion(inp=4, outp=4): conv4 takes inp*3 channels, which only matches the
    # concatenated 3*outp channels when inp == outp, so the test uses C == O == 4.
    N, C, H, W = 2, 4, 16, 16
    O = 4

    key = jax.random.PRNGKey(0)
    kx, k1, k2, k3, k4, k5, k6, k7, k8 = jax.random.split(key, 9)
    x = jax.random.normal(kx, (N, C, H, W), dtype=jnp.float32)

    def uinit(k, shape, fan_in):
        # PyTorch Conv2d default init: U(-1/sqrt(fan_in), 1/sqrt(fan_in)).
        bound = 1.0 / float(np.sqrt(fan_in))
        return jax.random.uniform(k, shape, jnp.float32, -bound, bound)

    conv1 = (uinit(k1, (O, C, 3, 3), C * 9), uinit(k2, (O,), C * 9))
    conv2 = (uinit(k3, (O, C, 3, 3), C * 9), uinit(k4, (O,), C * 9))
    conv3 = (uinit(k5, (O, C, 3, 3), C * 9), uinit(k6, (O,), C * 9))
    conv4 = (uinit(k7, (O, 3 * C, 1, 1), 3 * C), uinit(k8, (O,), 3 * C))

    out = multi_scale_fusion(x, conv1, conv2, conv3, conv4)
    out = jax.block_until_ready(out)

    ref = _reference(x, conv1, conv2, conv3, conv4)
    assert out.shape == (N, O, H, W), out.shape
    err = float(jnp.max(jnp.abs(out - ref)))
    # All compute stays f32 (the bf16 resize matrices are exact), so this only has to
    # absorb MXU multiply-precision differences; layout/indexing bugs would be O(0.1).
    assert jnp.allclose(out, ref, atol=5e-3, rtol=5e-3), err
    print("KERNEL_OK")
</pallas_src>

<mosaic_0001>
module attributes {stable_mosaic.version = 11 : i64} {
  func.func @_msf_kernel(%arg0: i32, %arg1: memref<8x640xf32, #tpu.memory_space<vmem>>, %arg2: memref<24x217xf32, #tpu.memory_space<vmem>>, %arg3: memref<3x360x256xbf16, #tpu.memory_space<vmem>>, %arg4: memref<8x25xf32, #tpu.memory_space<vmem>>, %arg5: memref<8x256xf32, #tpu.memory_space<vmem>>, %arg6: memref<216x360xf32, #tpu.memory_space<vmem>>) attributes {dimension_semantics = [#tpu.dimension_semantics<arbitrary>], iteration_bounds = array<i64: 1>, scalar_prefetch = 0 : i64, scratch_operands = 1 : i64, tpu.core_type = #tpu.core_type<tc>, window_params = [{pipeline_mode = #tpu.pipeline_mode<synchronous>, transform_indices = @transform_0, window_bounds = array<i64: 8, 640>}, {pipeline_mode = #tpu.pipeline_mode<synchronous>, transform_indices = @transform_1, window_bounds = array<i64: 24, 217>}, {pipeline_mode = #tpu.pipeline_mode<synchronous>, transform_indices = @transform_2, window_bounds = array<i64: 3, 360, 256>}, {pipeline_mode = #tpu.pipeline_mode<synchronous>, transform_indices = @transform_3, window_bounds = array<i64: 8, 25>}, {pipeline_mode = #tpu.pipeline_mode<synchronous>, transform_indices = @transform_4, window_bounds = array<i64: 8, 256>}]} {
    %c0 = arith.constant 0 : index
    %c0_0 = arith.constant 0 : index
    %0 = vector.load %arg1[%c0, %c0_0] : memref<8x640xf32, #tpu.memory_space<vmem>>, vector<8x640xf32>
    %1 = vector.extract_strided_slice %0 {offsets = [0, 0], sizes = [8, 360], strides = [1, 1]} : vector<8x640xf32> to vector<8x360xf32>
    %c0_1 = arith.constant 0 : index
    %c0_2 = arith.constant 0 : index
    %2 = vector.load %arg6[%c0_1, %c0_2] : memref<216x360xf32, #tpu.memory_space<vmem>>, vector<8x360xf32>
    tpu.vector_store %arg6[%c0_1, %c0_2], %1 {strides = array<i32>} : memref<216x360xf32, #tpu.memory_space<vmem>>, vector<8x360xf32>,
    %3 = vector.extract_strided_slice %0 {offsets = [0, 1], sizes = [8, 360], strides = [1, 1]} : vector<8x640xf32> to vector<8x360xf32>
    %c8 = arith.constant 8 : index
    %c0_3 = arith.constant 0 : index
    %4 = vector.load %arg6[%c8, %c0_3] : memref<216x360xf32, #tpu.memory_space<vmem>>, vector<8x360xf32>
    tpu.vector_store %arg6[%c8, %c0_3], %3 {strides = array<i32>} : memref<216x360xf32, #tpu.memory_space<vmem>>, vector<8x360xf32>,
    %5 = vector.extract_strided_slice %0 {offsets = [0, 2], sizes = [8, 360], strides = [1, 1]} : vector<8x640xf32> to vector<8x360xf32>
    %c16 = arith.constant 16 : index
    %c0_4 = arith.constant 0 : index
    %6 = vector.load %arg6[%c16, %c0_4] : memref<216x360xf32, #tpu.memory_space<vmem>>, vector<8x360xf32>
    tpu.vector_store %arg6[%c16, %c0_4], %5 {strides = array<i32>} : memref<216x360xf32, #tpu.memory_space<vmem>>, vector<8x360xf32>,
    %7 = vector.extract_strided_slice %0 {offsets = [0, 20], sizes = [8, 360], strides = [1, 1]} : vector<8x640xf32> to vector<8x360xf32>
    %c24 = arith.constant 24 : index
    %c0_5 = arith.constant 0 : index
    %8 = vector.load %arg6[%c24, %c0_5] : memref<216x360xf32, #tpu.memory_space<vmem>>, vector<8x360xf32>
    tpu.vector_store %arg6[%c24, %c0_5], %7 {strides = array<i32>} : memref<216x360xf32, #tpu.memory_space<vmem>>, vector<8x360xf32>,
    %9 = vector.extract_strided_slice %0 {offsets = [0, 21], sizes = [8, 360], strides = [1, 1]} : vector<8x640xf32> to vector<8x360xf32>
    %c32 = arith.constant 32 : index
    %c0_6 = arith.constant 0 : index
    %10 = vector.load %arg6[%c32, %c0_6] : memref<216x360xf32, #tpu.memory_space<vmem>>, vector<8x360xf32>
    tpu.vector_store %arg6[%c32, %c0_6], %9 {strides = array<i32>} : memref<216x360xf32, #tpu.memory_space<vmem>>, vector<8x360xf32>,
    %11 = vector.extract_strided_slice %0 {offsets = [0, 22], sizes = [8, 360], strides = [1, 1]} : vector<8x640xf32> to vector<8x360xf32>
    %c40 = arith.constant 40 : index
    %c0_7 = arith.constant 0 : index
    %12 = vector.load %arg6[%c40, %c0_7] : memref<216x360xf32, #tpu.memory_space<vmem>>, vector<8x360xf32>
    tpu.vector_store %arg6[%c40, %c0_7], %11 {strides = array<i32>} : memref<216x360xf32, #tpu.memory_space<vmem>>, vector<8x360xf32>,
    %13 = vector.extract_strided_slice %0 {offsets = [0, 40], sizes = [8, 360], strides = [1, 1]} : vector<8x640xf32> to vector<8x360xf32>
    %c48 = arith.constant 48 : index
    %c0_8 = arith.constant 0 : index
    %14 = vector.load %arg6[%c48, %c0_8] : memref<216x360xf32, #tpu.memory_space<vmem>>, vector<8x360xf32>
    tpu.vector_store %arg6[%c48, %c0_8], %13 {strides = array<i32>} : memref<216x360xf32, #tpu.memory_space<vmem>>, vector<8x360xf32>,
    %15 = vector.extract_strided_slice %0 {offsets = [0, 41], sizes = [8, 360], strides = [1, 1]} : vector<8x640xf32> to vector<8x360xf32>
    %c56 = arith.constant 56 : index
    %c0_9 = arith.constant 0 : index
    %16 = vector.load %arg6[%c56, %c0_9] : memref<216x360xf32, #tpu.memory_space<vmem>>, vector<8x360xf32>
    tpu.vector_store %arg6[%c56, %c0_9], %15 {strides = array<i32>} : memref<216x360xf32, #tpu.memory_space<vmem>>, vector<8x360xf32>,
    %17 = vector.extract_strided_slice %0 {offsets = [0, 42], sizes = [8, 360], strides = [1, 1]} : vector<8x640xf32> to vector<8x360xf32>
    %c64 = arith.constant 64 : index
    %c0_10 = arith.constant 0 : index
    %18 = vector.load %arg6[%c64, %c0_10] : memref<216x360xf32, #tpu.memory_space<vmem>>, vector<8x360xf32>
    tpu.vector_store %arg6[%c64, %c0_10], %17 {strides = array<i32>} : memref<216x360xf32, #tpu.memory_space<vmem>>, vector<8x360xf32>,
    %19 = vector.extract_strided_slice %0 {offsets = [0, 0], sizes = [8, 360], strides = [1, 1]} : vector<8x640xf32> to vector<8x360xf32>
    %c72 = arith.constant 72 : index
    %c0_11 = arith.constant 0 : index
    %20 = vector.load %arg6[%c72, %c0_11] : memref<216x360xf32, #tpu.memory_space<vmem>>, vector<8x360xf32>
    tpu.vector_store %arg6[%c72, %c0_11], %19 {strides = array<i32>} : memref<216x360xf32, #tpu.memory_space<vmem>>, vector<8x360xf32>,
    %21 = vector.extract_strided_slice %0 {offsets = [0, 2], sizes = [8, 360], strides = [1, 1]} : vector<8x640xf32> to vector<8x360xf32>
    %c80 = arith.constant 80 : index
    %c0_12 = arith.constant 0 : index
    %22 = vector.load %arg6[%c80, %c0_12] : memref<216x360xf32, #tpu.memory_space<vmem>>, vector<8x360xf32>
    tpu.vector_store %arg6[%c80, %c0_12], %21 {strides = array<i32>} : memref<216x360xf32, #tpu.memory_space<vmem>>, vector<8x360xf32>,
    %23 = vector.extract_strided_slice %0 {offsets = [0, 4], sizes = [8, 360], strides = [1, 1]} : vector<8x640xf32> to vector<8x360xf32>
    %c88 = arith.constant 88 : index
    %c0_13 = arith.constant 0 : index
    %24 = vector.load %arg6[%c88, %c0_13] : memref<216x360xf32, #tpu.memory_space<vmem>>, vector<8x360xf32>
    tpu.vector_store %arg6[%c88, %c0_13], %23 {strides = array<i32>} : memref<216x360xf32, #tpu.memory_space<vmem>>, vector<8x360xf32>,
    %25 = vector.extract_strided_slice %0 {offsets = [0, 40], sizes = [8, 360], strides = [1, 1]} : vector<8x640xf32> to vector<8x360xf32>
    %c96 = arith.constant 96 : index
    %c0_14 = arith.constant 0 : index
    %26 = vector.load %arg6[%c96, %c0_14] : memref<216x360xf32, #tpu.memory_space<vmem>>, vector<8x360xf32>
    tpu.vector_store %arg6[%c96, %c0_14], %25 {strides = array<i32>} : memref<216x360xf32, #tpu.memory_space<vmem>>, vector<8x360xf32>,
    %27 = vector.extract_strided_slice %0 {offsets = [0, 42], sizes = [8, 360], strides = [1, 1]} : vector<8x640xf32> to vector<8x360xf32>
    %c104 = arith.constant 104 : index
    %c0_15 = arith.constant 0 : index
    %28 = vector.load %arg6[%c104, %c0_15] : memref<216x360xf32, #tpu.memory_space<vmem>>, vector<8x360xf32>
    tpu.vector_store %arg6[%c104, %c0_15], %27 {strides = array<i32>} : memref<216x360xf32, #tpu.memory_space<vmem>>, vector<8x360xf32>,
    %29 = vector.extract_strided_slice %0 {offsets = [0, 44], sizes = [8, 360], strides = [1, 1]} : vector<8x640xf32> to vector<8x360xf32>
    %c112 = arith.constant 112 : index
    %c0_16 = arith.constant 0 : index
    %30 = vector.load %arg6[%c112, %c0_16] : memref<216x360xf32, #tpu.memory_space<vmem>>, vector<8x360xf32>
    tpu.vector_store %arg6[%c112, %c0_16], %29 {strides = array<i32>} : memref<216x360xf32, #tpu.memory_space<vmem>>, vector<8x360xf32>,
    %31 = vector.extract_strided_slice %0 {offsets = [0, 80], sizes = [8, 360], strides = [1, 1]} : vector<8x640xf32> to vector<8x360xf32>
    %c120 = arith.constant 120 : index
    %c0_17 = arith.constant 0 : index
    %32 = vector.load %arg6[%c120, %c0_17] : memref<216x360xf32, #tpu.memory_space<vmem>>, vector<8x360xf32>
    tpu.vector_store %arg6[%c120, %c0_17], %31 {strides = array<i32>} : memref<216x360xf32, #tpu.memory_space<vmem>>, vector<8x360xf32>,
    %33 = vector.extract_strided_slice %0 {offsets = [0, 82], sizes = [8, 360], strides = [1, 1]} : vector<8x640xf32> to vector<8x360xf32>
    %c128 = arith.constant 128 : index
    %c0_18 = arith.constant 0 : index
    %34 = vector.load %arg6[%c128, %c0_18] : memref<216x360xf32, #tpu.memory_space<vmem>>, vector<8x360xf32>
    tpu.vector_store %arg6[%c128, %c0_18], %33 {strides = array<i32>} : memref<216x360xf32, #tpu.memory_space<vmem>>, vector<8x360xf32>,
    %35 = vector.extract_strided_slice %0 {offsets = [0, 84], sizes = [8, 360], strides = [1, 1]} : vector<8x640xf32> to vector<8x360xf32>
    %c136 = arith.constant 136 : index
    %c0_19 = arith.constant 0 : index
    %36 = vector.load %arg6[%c136, %c0_19] : memref<216x360xf32, #tpu.memory_space<vmem>>, vector<8x360xf32>
    tpu.vector_store %arg6[%c136, %c0_19], %35 {strides = array<i32>} : memref<216x360xf32, #tpu.memory_space<vmem>>, vector<8x360xf32>,
    %37 = vector.extract_strided_slice %0 {offsets = [0, 0], sizes = [8, 360], strides = [1, 1]} : vector<8x640xf32> to vector<8x360xf32>
    %c144 = arith.constant 144 : index
    %c0_20 = arith.constant 0 : index
    %38 = vector.load %arg6[%c144, %c0_20] : memref<216x360xf32, #tpu.memory_space<vmem>>, vector<8x360xf32>
    tpu.vector_store %arg6[%c144, %c0_20], %37 {strides = array<i32>} : memref<216x360xf32, #tpu.memory_space<vmem>>, vector<8x360xf32>,
    %39 = vector.extract_strided_slice %0 {offsets = [0, 4], sizes = [8, 360], strides = [1, 1]} : vector<8x640xf32> to vector<8x360xf32>
    %c152 = arith.constant 152 : index
    %c0_21 = arith.constant 0 : index
    %40 = vector.load %arg6[%c152, %c0_21] : memref<216x360xf32, #tpu.memory_space<vmem>>, vector<8x360xf32>
    tpu.vector_store %arg6[%c152, %c0_21], %39 {strides = array<i32>} : memref<216x360xf32, #tpu.memory_space<vmem>>, vector<8x360xf32>,
    %41 = vector.extract_strided_slice %0 {offsets = [0, 8], sizes = [8, 360], strides = [1, 1]} : vector<8x640xf32> to vector<8x360xf32>
    %c160 = arith.constant 160 : index
    %c0_22 = arith.constant 0 : index
    %42 = vector.load %arg6[%c160, %c0_22] : memref<216x360xf32, #tpu.memory_space<vmem>>, vector<8x360xf32>
    tpu.vector_store %arg6[%c160, %c0_22], %41 {strides = array<i32>} : memref<216x360xf32, #tpu.memory_space<vmem>>, vector<8x360xf32>,
    %43 = vector.extract_strided_slice %0 {offsets = [0, 80], sizes = [8, 360], strides = [1, 1]} : vector<8x640xf32> to vector<8x360xf32>
    %c168 = arith.constant 168 : index
    %c0_23 = arith.constant 0 : index
    %44 = vector.load %arg6[%c168, %c0_23] : memref<216x360xf32, #tpu.memory_space<vmem>>, vector<8x360xf32>
    tpu.vector_store %arg6[%c168, %c0_23], %43 {strides = array<i32>} : memref<216x360xf32, #tpu.memory_space<vmem>>, vector<8x360xf32>,
    %45 = vector.extract_strided_slice %0 {offsets = [0, 84], sizes = [8, 360], strides = [1, 1]} : vector<8x640xf32> to vector<8x360xf32>
    %c176 = arith.constant 176 : index
    %c0_24 = arith.constant 0 : index
    %46 = vector.load %arg6[%c176, %c0_24] : memref<216x360xf32, #tpu.memory_space<vmem>>, vector<8x360xf32>
    tpu.vector_store %arg6[%c176, %c0_24], %45 {strides = array<i32>} : memref<216x360xf32, #tpu.memory_space<vmem>>, vector<8x360xf32>,
    %47 = vector.extract_strided_slice %0 {offsets = [0, 88], sizes = [8, 360], strides = [1, 1]} : vector<8x640xf32> to vector<8x360xf32>
    %c184 = arith.constant 184 : index
    %c0_25 = arith.constant 0 : index
    %48 = vector.load %arg6[%c184, %c0_25] : memref<216x360xf32, #tpu.memory_space<vmem>>, vector<8x360xf32>
    tpu.vector_store %arg6[%c184, %c0_25], %47 {strides = array<i32>} : memref<216x360xf32, #tpu.memory_space<vmem>>, vector<8x360xf32>,
    %49 = vector.extract_strided_slice %0 {offsets = [0, 160], sizes = [8, 360], strides = [1, 1]} : vector<8x640xf32> to vector<8x360xf32>
    %c192 = arith.constant 192 : index
    %c0_26 = arith.constant 0 : index
    %50 = vector.load %arg6[%c192, %c0_26] : memref<216x360xf32, #tpu.memory_space<vmem>>, vector<8x360xf32>
    tpu.vector_store %arg6[%c192, %c0_26], %49 {strides = array<i32>} : memref<216x360xf32, #tpu.memory_space<vmem>>, vector<8x360xf32>,
    %51 = vector.extract_strided_slice %0 {offsets = [0, 164], sizes = [8, 360], strides = [1, 1]} : vector<8x640xf32> to vector<8x360xf32>
    %c200 = arith.constant 200 : index
    %c0_27 = arith.constant 0 : index
    %52 = vector.load %arg6[%c200, %c0_27] : memref<216x360xf32, #tpu.memory_space<vmem>>, vector<8x360xf32>
    tpu.vector_store %arg6[%c200, %c0_27], %51 {strides = array<i32>} : memref<216x360xf32, #tpu.memory_space<vmem>>, vector<8x360xf32>,
    %53 = vector.extract_strided_slice %0 {offsets = [0, 168], sizes = [8, 360], strides = [1, 1]} : vector<8x640xf32> to vector<8x360xf32>
    %c208 = arith.constant 208 : index
    %c0_28 = arith.constant 0 : index
    %54 = vector.load %arg6[%c208, %c0_28] : memref<216x360xf32, #tpu.memory_space<vmem>>, vector<8x360xf32>
    tpu.vector_store %arg6[%c208, %c0_28], %53 {strides = array<i32>} : memref<216x360xf32, #tpu.memory_space<vmem>>, vector<8x360xf32>,
    %c0_29 = arith.constant 0 : index
    %c0_30 = arith.constant 0 : index
    %55 = vector.load %arg2[%c0_29, %c0_30] : memref<24x217xf32, #tpu.memory_space<vmem>>, vector<24x217xf32>
    %56 = vector.extract_strided_slice %55 {offsets = [0, 0], sizes = [24, 216], strides = [1, 1]} : vector<24x217xf32> to vector<24x216xf32>
    %c0_31 = arith.constant 0 : index
    %c0_32 = arith.constant 0 : index
    %57 = vector.load %arg6[%c0_31, %c0_32] : memref<216x360xf32, #tpu.memory_space<vmem>>, vector<216x360xf32>
    %cst = arith.constant dense<0.000000e+00> : vector<24x360xf32>
    %58 = tpu.matmul %56, %57, %cst {dimension_numbers = #tpu.dot_dimension_numbers<[1], [0], [0], [1], [0, 0, 1, 1], [], []>} : vector<24x216xf32>, vector<216x360xf32>, vector<24x360xf32> -> vector<24x360xf32>
    %59 = vector.extract_strided_slice %55 {offsets = [0, 216], sizes = [24, 1], strides = [1, 1]} : vector<24x217xf32> to vector<24x1xf32>
    %60 = vector.broadcast %59 : vector<24x1xf32> to vector<24x360xf32>
    %61 = arith.addf %58, %60 : vector<24x360xf32>
    %cst_33 = arith.constant 0.000000e+00 : f32
    %62 = vector.broadcast %cst_33 : f32 to vector<24x360xf32>
    %63 = arith.maximumf %61, %62 : vector<24x360xf32>
    %64 = vector.extract_strided_slice %63 {offsets = [0, 0], sizes = [8, 360], strides = [1, 1]} : vector<24x360xf32> to vector<8x360xf32>
    %c0_34 = arith.constant 0 : index
    %c0_35 = arith.constant 0 : index
    %c0_36 = arith.constant 0 : index
    %65 = vector.load %arg3[%c0_34, %c0_35, %c0_36] : memref<3x360x256xbf16, #tpu.memory_space<vmem>>, vector<1x360x256xbf16>
    %66 = vector.shape_cast %65 : vector<1x360x256xbf16> to vector<360x256xbf16>
    %67 = arith.extf %66 : vector<360x256xbf16> to vector<360x256xf32>
    %cst_37 = arith.constant dense<0.000000e+00> : vector<8x256xf32>
    %68 = tpu.matmul %64, %67, %cst_37 {dimension_numbers = #tpu.dot_dimension_numbers<[1], [0], [0], [1], [0, 0, 1, 1], [], []>} : vector<8x360xf32>, vector<360x256xf32>, vector<8x256xf32> -> vector<8x256xf32>
    %69 = vector.extract_strided_slice %63 {offsets = [8, 0], sizes = [8, 360], strides = [1, 1]} : vector<24x360xf32> to vector<8x360xf32>
    %c1 = arith.constant 1 : index
    %c0_38 = arith.constant 0 : index
    %c0_39 = arith.constant 0 : index
    %70 = vector.load %arg3[%c1, %c0_38, %c0_39] : memref<3x360x256xbf16, #tpu.memory_space<vmem>>, vector<1x360x256xbf16>
    %71 = vector.shape_cast %70 : vector<1x360x256xbf16> to vector<360x256xbf16>
    %72 = arith.extf %71 : vector<360x256xbf16> to vector<360x256xf32>
    %cst_40 = arith.constant dense<0.000000e+00> : vector<8x256xf32>
    %73 = tpu.matmul %69, %72, %cst_40 {dimension_numbers = #tpu.dot_dimension_numbers<[1], [0], [0], [1], [0, 0, 1, 1], [], []>} : vector<8x360xf32>, vector<360x256xf32>, vector<8x256xf32> -> vector<8x256xf32>
    %74 = vector.extract_strided_slice %63 {offsets = [16, 0], sizes = [8, 360], strides = [1, 1]} : vector<24x360xf32> to vector<8x360xf32>
    %c2 = arith.constant 2 : index
    %c0_41 = arith.constant 0 : index
    %c0_42 = arith.constant 0 : index
    %75 = vector.load %arg3[%c2, %c0_41, %c0_42] : memref<3x360x256xbf16, #tpu.memory_space<vmem>>, vector<1x360x256xbf16>
    %76 = vector.shape_cast %75 : vector<1x360x256xbf16> to vector<360x256xbf16>
    %77 = arith.extf %76 : vector<360x256xbf16> to vector<360x256xf32>
    %cst_43 = arith.constant dense<0.000000e+00> : vector<8x256xf32>
    %78 = tpu.matmul %74, %77, %cst_43 {dimension_numbers = #tpu.dot_dimension_numbers<[1], [0], [0], [1], [0, 0, 1, 1], [], []>} : vector<8x360xf32>, vector<360x256xf32>, vector<8x256xf32> -> vector<8x256xf32>
    %79 = tpu.concatenate %68, %73, %78 in 0 : vector<8x256xf32>, vector<8x256xf32>, vector<8x256xf32> -> vector<24x256xf32>
    %c0_44 = arith.constant 0 : index
    %c0_45 = arith.constant 0 : index
    %80 = vector.load %arg4[%c0_44, %c0_45] : memref<8x25xf32, #tpu.memory_space<vmem>>, vector<8x25xf32>
    %81 = vector.extract_strided_slice %80 {offsets = [0, 0], sizes = [8, 24], strides = [1, 1]} : vector<8x25xf32> to vector<8x24xf32>
    %cst_46 = arith.constant dense<0.000000e+00> : vector<8x256xf32>
    %82 = tpu.matmul %81, %79, %cst_46 {dimension_numbers = #tpu.dot_dimension_numbers<[1], [0], [0], [1], [0, 0, 1, 1], [], []>} : vector<8x24xf32>, vector<24x256xf32>, vector<8x256xf32> -> vector<8x256xf32>
    %83 = vector.extract_strided_slice %80 {offsets = [0, 24], sizes = [8, 1], strides = [1, 1]} : vector<8x25xf32> to vector<8x1xf32>
    %84 = vector.broadcast %83 : vector<8x1xf32> to vector<8x256xf32>
    %85 = arith.addf %82, %84 : vector<8x256xf32>
    %c0_47 = arith.constant 0 : index
    %c0_48 = arith.constant 0 : index
    %86 = vector.load %arg5[%c0_47, %c0_48] : memref<8x256xf32, #tpu.memory_space<vmem>>, vector<8x256xf32>
    tpu.vector_store %arg5[%c0_47, %c0_48], %85 {strides = array<i32>} : memref<8x256xf32, #tpu.memory_space<vmem>>, vector<8x256xf32>,
    return
  }
  func.func @transform_0(%arg0: i32) -> (i32, i32) {
    %c0_i32 = arith.constant 0 : i32
    %c0_i32_0 = arith.constant 0 : i32
    %c0_i32_1 = arith.constant 0 : i32
    return %c0_i32, %c0_i32_0 : i32, i32
  }
  func.func @transform_1(%arg0: i32) -> (i32, i32) {
    %c0_i32 = arith.constant 0 : i32
    %c0_i32_0 = arith.constant 0 : i32
    %c0_i32_1 = arith.constant 0 : i32
    return %c0_i32, %c0_i32_0 : i32, i32
  }
  func.func @transform_2(%arg0: i32) -> (i32, i32, i32) {
    %c0_i32 = arith.constant 0 : i32
    %c0_i32_0 = arith.constant 0 : i32
    %c0_i32_1 = arith.constant 0 : i32
    %c0_i32_2 = arith.constant 0 : i32
    return %c0_i32, %c0_i32_0, %c0_i32_1 : i32, i32, i32
  }
  func.func @transform_3(%arg0: i32) -> (i32, i32) {
    %c0_i32 = arith.constant 0 : i32
    %c0_i32_0 = arith.constant 0 : i32
    %c0_i32_1 = arith.constant 0 : i32
    return %c0_i32, %c0_i32_0 : i32, i32
  }
  func.func @transform_4(%arg0: i32) -> (i32, i32) {
    %c0_i32 = arith.constant 0 : i32
    %c0_i32_0 = arith.constant 0 : i32
    %c0_i32_1 = arith.constant 0 : i32
    return %c0_i32, %c0_i32_0 : i32, i32
  }
}

</mosaic_0001>

<llo_original>
// kernel: tpu_custom_call.1
$region0: #{tpu_custom_call.1}
  #allocation0 [shape = 'u32[]', space=smem, size = 0x4, offset = 0x4, fixed_abs, tag = 'smem constant byte address 0x4 - core index']
  #allocation1 [shape = 'u32[144,128]{1,0:T(1,128)}', space=vmem, size = 0x12000, scoped, tag = 'internal scratch']
  #allocation2 [shape = 'f32[216,360]{1,0:T(8,128)}', space=vmem, size = 0x51000, scoped, tag = 'scratch operand']
  %s0 = inlined_call_operand.hbm [shape: f32[8,640], index: 0, kind: input, shape index: {}]
  %s1 = inlined_call_operand.hbm [shape: f32[24,217], index: 1, kind: input, shape index: {}]
  %s2 = inlined_call_operand.hbm [shape: bf16[3,360,256], index: 2, kind: input, shape index: {}]
  %s3 = inlined_call_operand.hbm [shape: f32[8,25], index: 3, kind: input, shape index: {}]
  %s4 = inlined_call_operand.hbm [shape: f32[8,256], index: 4, kind: output, shape index: {}]
  %s5 = sld [smem:[#allocation0]]
  $region42: #{tpu_custom_call.1} parent=0
    _
  %s7 = ssub.s32 1, %s5
  %s8 = scalar_select 0, %s7, %s5
  $region1: #{tpu_custom_call.1} parent=0
    #allocation3 [shape = 'u8[20480]{0}', space=vmem, size = 0x5000, scoped, tag = 'input window, operand 0, single buffered']
    #allocation4 [shape = 's32[1]{0}', space=sflag, size = 0x4, scoped, tag = 'scoped memory for tpu_custom_call.1']
    #allocation5 [shape = 's32[1]{0}', space=sflag, size = 0x4, scoped, tag = 'scoped memory for tpu_custom_call.1']
    #allocation6 [shape = 'u8[24576]{0}', space=vmem, size = 0x6000, scoped, tag = 'input window, operand 1, single buffered']
    #allocation7 [shape = 's32[1]{0}', space=sflag, size = 0x4, scoped, tag = 'scoped memory for tpu_custom_call.1']
    #allocation8 [shape = 'u8[552960]{0}', space=vmem, size = 0x87000, scoped, tag = 'input window, operand 2, single buffered']
    #allocation9 [shape = 'u8[4096]{0}', space=vmem, size = 0x1000, scoped, tag = 'input window, operand 3, single buffered']
    #allocation10 [shape = 's32[1]{0}', space=sflag, size = 0x4, scoped, tag = 'scoped memory for tpu_custom_call.1']
    #allocation11 [shape = 'u8[8192]{0}', space=vmem, size = 0x2000, scoped, tag = 'output window, operand 0, single buffered']
    %9 = vsyncpa [#allocation4], 0
    %10 = vsyncpa [#allocation7], 0
    %11 = vsyncpa [#allocation10], 0
    %12 = vsyncpa [#allocation5], 0
    // Predicated region
    $region2: #{tpu_custom_call.1} parent=1 // pred_check
      _
    $region3: #{tpu_custom_call.1} parent=1 // pred_check_branch
      %14 = sbr.rel (0) target = $region5
    $region4: #{tpu_custom_call.1} parent=1 // pred_region
      %s16 = ssub.s32 640, 640
      %17 = vsyncadd [#allocation4], %s16
      %s19 = sshll.u32 [#allocation3], 4
      %s20 = int_to_ptr.vmem [resolvable:$true] %s19
      %22 = dma.hbm_to_vmem [thread:$0]  %s0, 640, %s20, [#allocation4]
    $region5: #{tpu_custom_call.1} parent=1 // pred_fallthru
      _
    // Predicated region
    $region6: #{tpu_custom_call.1} parent=1 // pred_check
      _
    $region7: #{tpu_custom_call.1} parent=1 // pred_check_branch
      %24 = sbr.rel (0) target = $region9
    $region8: #{tpu_custom_call.1} parent=1 // pred_region
      %s26 = ssub.s32 768, 768
      %27 = vsyncadd [#allocation7], %s26
      %s28 = sshll.u32 [#allocation6], 4
      %s29 = int_to_ptr.vmem [resolvable:$true] %s28
      %34 = dma.hbm_to_vmem [thread:$0]  %s1, 768, %s29, [#allocation7], 256, 256, 16
    $region9: #{tpu_custom_call.1} parent=1 // pred_fallthru
      _
    // Predicated region
    $region10: #{tpu_custom_call.1} parent=1 // pred_check
      _
    $region11: #{tpu_custom_call.1} parent=1 // pred_check_branch
      %36 = sbr.rel (0) target = $region13
    $region12: #{tpu_custom_call.1} parent=1 // pred_region
      %s38 = ssub.s32 17280, 17280
      %39 = vsyncadd [#allocation7], %s38
      %s40 = sshll.u32 [#allocation8], 4
      %s41 = int_to_ptr.vmem [resolvable:$true] %s40
      %46 = dma.hbm_to_vmem [thread:$0]  %s2, 17280, %s41, [#allocation7], 128, 128, 8
    $region13: #{tpu_custom_call.1} parent=1 // pred_fallthru
      _
    // Predicated region
    $region14: #{tpu_custom_call.1} parent=1 // pred_check
      _
    $region15: #{tpu_custom_call.1} parent=1 // pred_check_branch
      %48 = sbr.rel (0) target = $region17
    $region16: #{tpu_custom_call.1} parent=1 // pred_region
      %s50 = ssub.s32 128, 128
      %51 = vsyncadd [#allocation10], %s50
      %s53 = sshll.u32 [#allocation9], 4
      %s54 = int_to_ptr.vmem [resolvable:$true] %s53
      %56 = dma.hbm_to_vmem [thread:$0]  %s3, 128, %s54, [#allocation10]
    $region17: #{tpu_custom_call.1} parent=1 // pred_fallthru
      _
    // Predicated region
    $region18: #{tpu_custom_call.1} parent=1 // pred_check
      _
    $region19: #{tpu_custom_call.1} parent=1 // pred_check_branch
      %58 = sbr.rel (0) target = $region21
    $region20: #{tpu_custom_call.1} parent=1 // pred_region
      %59 = dma.done [#allocation4], 640
    $region21: #{tpu_custom_call.1} parent=1 // pred_fallthru
      _
    // Predicated region
    $region22: #{tpu_custom_call.1} parent=1 // pred_check
      _
    $region23: #{tpu_custom_call.1} parent=1 // pred_check_branch
      %61 = sbr.rel (0) target = $region25
    $region24: #{tpu_custom_call.1} parent=1 // pred_region
      %62 = dma.done [#allocation7], 768
    $region25: #{tpu_custom_call.1} parent=1 // pred_fallthru
      _
    // Predicated region
    $region26: #{tpu_custom_call.1} parent=1 // pred_check
      _
    $region27: #{tpu_custom_call.1} parent=1 // pred_check_branch
      %64 = sbr.rel (0) target = $region29
    $region28: #{tpu_custom_call.1} parent=1 // pred_region
      %65 = dma.done [#allocation7], 17280
    $region29: #{tpu_custom_call.1} parent=1 // pred_fallthru
      _
    // Predicated region
    $region30: #{tpu_custom_call.1} parent=1 // pred_check
      _
    $region31: #{tpu_custom_call.1} parent=1 // pred_check_branch
      %67 = sbr.rel (0) target = $region33
    $region32: #{tpu_custom_call.1} parent=1 // pred_region
      %68 = dma.done [#allocation10], 128
    $region33: #{tpu_custom_call.1} parent=1 // pred_fallthru
      _
    %v69 = vld [vmem:[#allocation3] sm:$0xff]
    %v70 = vld [vmem:[#allocation3 + $0x8] sm:$0xff]
    %v71 = vld [vmem:[#allocation3 + $0x10] sm:$0xff]
    %v72 = vld [vmem:[#allocation3 + $0x18] sm:$0xff]
    %v73 = vld [vmem:[#allocation3 + $0x20] sm:$0xff]
    %74 = vst [vmem:[#allocation2] sm:$0xff] %v69
    %75 = vst [vmem:[#allocation2 + $0x8] sm:$0xff] %v70
    %vm76 = vcmask 850944
    %77 = vst.msk [vmem:[#allocation2 + $0x10] sm:$0xff] %vm76, %v71
    %81 = vrot.lane.b32.xlu0 %v69, 127
    %v82 = vpop.permute.xlu0 %81
    %83 = vrot.lane.b32.xlu0 %v70, 127
    %v84 = vpop.permute.xlu0 %83
    %85 = vrot.lane.b32.xlu0 %v71, 127
    %v86 = vpop.permute.xlu0 %85
    %vm87 = vcmask 1039360
    %v88 = vsel %vm87, %v82, %v84
    %v89 = vsel %vm87, %v84, %v86
    %93 = vst [vmem:[#allocation2 + $0x18] sm:$0xff] %v88
    %94 = vst [vmem:[#allocation2 + $0x20] sm:$0xff] %v89
    %95 = vst.msk [vmem:[#allocation2 + $0x28] sm:$0xff] %vm76, %v86
    %96 = vrot.lane.b32.xlu0 %v69, 126
    %v97 = vpop.permute.xlu0 %96
    %98 = vrot.lane.b32.xlu0 %v70, 126
    %v99 = vpop.permute.xlu0 %98
    %100 = vrot.lane.b32.xlu0 %v71, 126
    %v101 = vpop.permute.xlu0 %100
    %vm102 = vcmask 1031168
    %v103 = vsel %vm102, %v97, %v99
    %v104 = vsel %vm102, %v99, %v101
    %108 = vst [vmem:[#allocation2 + $0x30] sm:$0xff] %v103
    %109 = vst [vmem:[#allocation2 + $0x38] sm:$0xff] %v104
    %110 = vst.msk [vmem:[#allocation2 + $0x40] sm:$0xff] %vm76, %v101
    %111 = vrot.lane.b32.xlu0 %v69, 108
    %v112 = vpop.permute.xlu0 %111
    %113 = vrot.lane.b32.xlu0 %v70, 108
    %v114 = vpop.permute.xlu0 %113
    %115 = vrot.lane.b32.xlu0 %v71, 108
    %v116 = vpop.permute.xlu0 %115
    %vm117 = vcmask 883712
    %v118 = vsel %vm117, %v112, %v114
    %v119 = vsel %vm117, %v114, %v116
    %123 = vst [vmem:[#allocation2 + $0x48] sm:$0xff] %v118
    %124 = vst [vmem:[#allocation2 + $0x50] sm:$0xff] %v119
    %125 = vst.msk [vmem:[#allocation2 + $0x58] sm:$0xff] %vm76, %v116
    %126 = vrot.lane.b32.xlu0 %v69, 107
    %v127 = vpop.permute.xlu0 %126
    %128 = vrot.lane.b32.xlu0 %v70, 107
    %v129 = vpop.permute.xlu0 %128
    %130 = vrot.lane.b32.xlu0 %v71, 107
    %v131 = vpop.permute.xlu0 %130
    %vm132 = vcmask 875520
    %v133 = vsel %vm132, %v127, %v129
    %v134 = vsel %vm132, %v129, %v131
    %138 = vst [vmem:[#allocation2 + $0x60] sm:$0xff] %v133
    %139 = vst [vmem:[#allocation2 + $0x68] sm:$0xff] %v134
    %140 = vst.msk [vmem:[#allocation2 + $0x70] sm:$0xff] %vm76, %v131
    %141 = vrot.lane.b32.xlu0 %v69, 106
    %v142 = vpop.permute.xlu0 %141
    %143 = vrot.lane.b32.xlu0 %v70, 106
    %v144 = vpop.permute.xlu0 %143
    %145 = vrot.lane.b32.xlu0 %v71, 106
    %v146 = vpop.permute.xlu0 %145
    %vm147 = vcmask 867328
    %v148 = vsel %vm147, %v142, %v144
    %v149 = vsel %vm147, %v144, %v146
    %153 = vst [vmem:[#allocation2 + $0x78] sm:$0xff] %v148
    %154 = vst [vmem:[#allocation2 + $0x80] sm:$0xff] %v149
    %155 = vst.msk [vmem:[#allocation2 + $0x88] sm:$0xff] %vm76, %v146
    %157 = vrot.lane.b32.xlu0 %v69, 88
    %v158 = vpop.permute.xlu0 %157
    %159 = vrot.lane.b32.xlu0 %v70, 88
    %v160 = vpop.permute.xlu0 %159
    %161 = vrot.lane.b32.xlu0 %v71, 88
    %v162 = vpop.permute.xlu0 %161
    %163 = vrot.lane.b32.xlu0 %v72, 88
    %v164 = vpop.permute.xlu0 %163
    %vm165 = vcmask 719872
    %v166 = vsel %vm165, %v158, %v160
    %v167 = vsel %vm165, %v160, %v162
    %v168 = vsel %vm165, %v162, %v164
    %172 = vst [vmem:[#allocation2 + $0x90] sm:$0xff] %v166
    %173 = vst [vmem:[#allocation2 + $0x98] sm:$0xff] %v167
    %174 = vst.msk [vmem:[#allocation2 + $0xa0] sm:$0xff] %vm76, %v168
    %175 = vrot.lane.b32.xlu0 %v69, 87
    %v176 = vpop.permute.xlu0 %175
    %177 = vrot.lane.b32.xlu0 %v70, 87
    %v178 = vpop.permute.xlu0 %177
    %179 = vrot.lane.b32.xlu0 %v71, 87
    %v180 = vpop.permute.xlu0 %179
    %181 = vrot.lane.b32.xlu0 %v72, 87
    %v182 = vpop.permute.xlu0 %181
    %vm183 = vcmask 711680
    %v184 = vsel %vm183, %v176, %v178
    %v185 = vsel %vm183, %v178, %v180
    %v186 = vsel %vm183, %v180, %v182
    %190 = vst [vmem:[#allocation2 + $0xa8] sm:$0xff] %v184
    %191 = vst [vmem:[#allocation2 + $0xb0] sm:$0xff] %v185
    %192 = vst.msk [vmem:[#allocation2 + $0xb8] sm:$0xff] %vm76, %v186
    %193 = vrot.lane.b32.xlu0 %v69, 86
    %v194 = vpop.permute.xlu0 %193
    %195 = vrot.lane.b32.xlu0 %v70, 86
    %v196 = vpop.permute.xlu0 %195
    %197 = vrot.lane.b32.xlu0 %v71, 86
    %v198 = vpop.permute.xlu0 %197
    %199 = vrot.lane.b32.xlu0 %v72, 86
    %v200 = vpop.permute.xlu0 %199
    %vm201 = vcmask 703488
    %v202 = vsel %vm201, %v194, %v196
    %v203 = vsel %vm201, %v196, %v198
    %v204 = vsel %vm201, %v198, %v200
    %208 = vst [vmem:[#allocation2 + $0xc0] sm:$0xff] %v202
    %209 = vst [vmem:[#allocation2 + $0xc8] sm:$0xff] %v203
    %210 = vst.msk [vmem:[#allocation2 + $0xd0] sm:$0xff] %vm76, %v204
    %211 = vst [vmem:[#allocation2 + $0xd8] sm:$0xff] %v69
    %212 = vst [vmem:[#allocation2 + $0xe0] sm:$0xff] %v70
    %213 = vst.msk [vmem:[#allocation2 + $0xe8] sm:$0xff] %vm76, %v71
    %214 = vst [vmem:[#allocation2 + $0xf0] sm:$0xff] %v103
    %215 = vst [vmem:[#allocation2 + $0xf8] sm:$0xff] %v104
    %216 = vst.msk [vmem:[#allocation2 + $0x100] sm:$0xff] %vm76, %v101
    %217 = vrot.lane.b32.xlu0 %v69, 124
    %v218 = vpop.permute.xlu0 %217
    %219 = vrot.lane.b32.xlu0 %v70, 124
    %v220 = vpop.permute.xlu0 %219
    %221 = vrot.lane.b32.xlu0 %v71, 124
    %v222 = vpop.permute.xlu0 %221
    %vm223 = vcmask 1014784
    %v224 = vsel %vm223, %v218, %v220
    %v225 = vsel %vm223, %v220, %v222
    %229 = vst [vmem:[#allocation2 + $0x108] sm:$0xff] %v224
    %230 = vst [vmem:[#allocation2 + $0x110] sm:$0xff] %v225
    %231 = vst.msk [vmem:[#allocation2 + $0x118] sm:$0xff] %vm76, %v222
    %232 = vst [vmem:[#allocation2 + $0x120] sm:$0xff] %v166
    %233 = vst [vmem:[#allocation2 + $0x128] sm:$0xff] %v167
    %234 = vst.msk [vmem:[#allocation2 + $0x130] sm:$0xff] %vm76, %v168
    %235 = vst [vmem:[#allocation2 + $0x138] sm:$0xff] %v202
    %236 = vst [vmem:[#allocation2 + $0x140] sm:$0xff] %v203
    %237 = vst.msk [vmem:[#allocation2 + $0x148] sm:$0xff] %vm76, %v204
    %238 = vrot.lane.b32.xlu0 %v69, 84
    %v239 = vpop.permute.xlu0 %238
    %240 = vrot.lane.b32.xlu0 %v70, 84
    %v241 = vpop.permute.xlu0 %240
    %242 = vrot.lane.b32.xlu0 %v71, 84
    %v243 = vpop.permute.xlu0 %242
    %244 = vrot.lane.b32.xlu0 %v72, 84
    %v245 = vpop.permute.xlu0 %244
    %vm246 = vcmask 687104
    %v247 = vsel %vm246, %v239, %v241
    %v248 = vsel %vm246, %v241, %v243
    %v249 = vsel %vm246, %v243, %v245
    %253 = vst [vmem:[#allocation2 + $0x150] sm:$0xff] %v247
    %254 = vst [vmem:[#allocation2 + $0x158] sm:$0xff] %v248
    %255 = vst.msk [vmem:[#allocation2 + $0x160] sm:$0xff] %vm76, %v249
    %256 = vrot.lane.b32.xlu0 %v69, 48
    %v257 = vpop.permute.xlu0 %256
    %258 = vrot.lane.b32.xlu0 %v70, 48
    %v259 = vpop.permute.xlu0 %258
    %260 = vrot.lane.b32.xlu0 %v71, 48
    %v261 = vpop.permute.xlu0 %260
    %262 = vrot.lane.b32.xlu0 %v72, 48
    %v263 = vpop.permute.xlu0 %262
    %vm264 = vcmask 392192
    %v265 = vsel %vm264, %v257, %v259
    %v266 = vsel %vm264, %v259, %v261
    %v267 = vsel %vm264, %v261, %v263
    %271 = vst [vmem:[#allocation2 + $0x168] sm:$0xff] %v265
    %272 = vst [vmem:[#allocation2 + $0x170] sm:$0xff] %v266
    %273 = vst.msk [vmem:[#allocation2 + $0x178] sm:$0xff] %vm76, %v267
    %274 = vrot.lane.b32.xlu0 %v69, 46
    %v275 = vpop.permute.xlu0 %274
    %276 = vrot.lane.b32.xlu0 %v70, 46
    %v277 = vpop.permute.xlu0 %276
    %278 = vrot.lane.b32.xlu0 %v71, 46
    %v279 = vpop.permute.xlu0 %278
    %280 = vrot.lane.b32.xlu0 %v72, 46
    %v281 = vpop.permute.xlu0 %280
    %vm282 = vcmask 375808
    %v283 = vsel %vm282, %v275, %v277
    %v284 = vsel %vm282, %v277, %v279
    %v285 = vsel %vm282, %v279, %v281
    %289 = vst [vmem:[#allocation2 + $0x180] sm:$0xff] %v283
    %290 = vst [vmem:[#allocation2 + $0x188] sm:$0xff] %v284
    %291 = vst.msk [vmem:[#allocation2 + $0x190] sm:$0xff] %vm76, %v285
    %292 = vrot.lane.b32.xlu0 %v69, 44
    %v293 = vpop.permute.xlu0 %292
    %294 = vrot.lane.b32.xlu0 %v70, 44
    %v295 = vpop.permute.xlu0 %294
    %296 = vrot.lane.b32.xlu0 %v71, 44
    %v297 = vpop.permute.xlu0 %296
    %298 = vrot.lane.b32.xlu0 %v72, 44
    %v299 = vpop.permute.xlu0 %298
    %vm300 = vcmask 359424
    %v301 = vsel %vm300, %v293, %v295
    %v302 = vsel %vm300, %v295, %v297
    %v303 = vsel %vm300, %v297, %v299
    %307 = vst [vmem:[#allocation2 + $0x198] sm:$0xff] %v301
    %308 = vst [vmem:[#allocation2 + $0x1a0] sm:$0xff] %v302
    %309 = vst.msk [vmem:[#allocation2 + $0x1a8] sm:$0xff] %vm76, %v303
    %310 = vst [vmem:[#allocation2 + $0x1b0] sm:$0xff] %v69
    %311 = vst [vmem:[#allocation2 + $0x1b8] sm:$0xff] %v70
    %312 = vst.msk [vmem:[#allocation2 + $0x1c0] sm:$0xff] %vm76, %v71
    %313 = vst [vmem:[#allocation2 + $0x1c8] sm:$0xff] %v224
    %314 = vst [vmem:[#allocation2 + $0x1d0] sm:$0xff] %v225
    %315 = vst.msk [vmem:[#allocation2 + $0x1d8] sm:$0xff] %vm76, %v222
    %316 = vrot.lane.b32.xlu0 %v69, 120
    %v317 = vpop.permute.xlu0 %316
    %318 = vrot.lane.b32.xlu0 %v70, 120
    %v319 = vpop.permute.xlu0 %318
    %320 = vrot.lane.b32.xlu0 %v71, 120
    %v321 = vpop.permute.xlu0 %320
    %vm322 = vcmask 982016
    %v323 = vsel %vm322, %v317, %v319
    %v324 = vsel %vm322, %v319, %v321
    %328 = vst [vmem:[#allocation2 + $0x1e0] sm:$0xff] %v323
    %329 = vst [vmem:[#allocation2 + $0x1e8] sm:$0xff] %v324
    %330 = vst.msk [vmem:[#allocation2 + $0x1f0] sm:$0xff] %vm76, %v321
    %331 = vst [vmem:[#allocation2 + $0x1f8] sm:$0xff] %v265
    %332 = vst [vmem:[#allocation2 + $0x200] sm:$0xff] %v266
    %333 = vst.msk [vmem:[#allocation2 + $0x208] sm:$0xff] %vm76, %v267
    %334 = vst [vmem:[#allocation2 + $0x210] sm:$0xff] %v301
    %335 = vst [vmem:[#allocation2 + $0x218] sm:$0xff] %v302
    %336 = vst.msk [vmem:[#allocation2 + $0x220] sm:$0xff] %vm76, %v303
    %337 = vrot.lane.b32.xlu0 %v69, 40
    %v338 = vpop.permute.xlu0 %337
    %339 = vrot.lane.b32.xlu0 %v70, 40
    %v340 = vpop.permute.xlu0 %339
    %341 = vrot.lane.b32.xlu0 %v71, 40
    %v342 = vpop.permute.xlu0 %341
    %343 = vrot.lane.b32.xlu0 %v72, 40
    %v344 = vpop.permute.xlu0 %343
    %vm345 = vcmask 326656
    %v346 = vsel %vm345, %v338, %v340
    %v347 = vsel %vm345, %v340, %v342
    %v348 = vsel %vm345, %v342, %v344
    %352 = vst [vmem:[#allocation2 + $0x228] sm:$0xff] %v346
    %353 = vst [vmem:[#allocation2 + $0x230] sm:$0xff] %v347
    %354 = vst.msk [vmem:[#allocation2 + $0x238] sm:$0xff] %vm76, %v348
    %356 = vrot.lane.b32.xlu0 %v70, 96
    %v357 = vpop.permute.xlu0 %356
    %358 = vrot.lane.b32.xlu0 %v71, 96
    %v359 = vpop.permute.xlu0 %358
    %360 = vrot.lane.b32.xlu0 %v72, 96
    %v361 = vpop.permute.xlu0 %360
    %362 = vrot.lane.b32.xlu0 %v73, 96
    %v363 = vpop.permute.xlu0 %362
    %vm364 = vcmask 785408
    %v365 = vsel %vm364, %v357, %v359
    %v366 = vsel %vm364, %v359, %v361
    %v367 = vsel %vm364, %v361, %v363
    %371 = vst [vmem:[#allocation2 + $0x240] sm:$0xff] %v365
    %372 = vst [vmem:[#allocation2 + $0x248] sm:$0xff] %v366
    %373 = vst.msk [vmem:[#allocation2 + $0x250] sm:$0xff] %vm76, %v367
    %374 = vrot.lane.b32.xlu0 %v70, 92
    %v375 = vpop.permute.xlu0 %374
    %376 = vrot.lane.b32.xlu0 %v71, 92
    %v377 = vpop.permute.xlu0 %376
    %378 = vrot.lane.b32.xlu0 %v72, 92
    %v379 = vpop.permute.xlu0 %378
    %380 = vrot.lane.b32.xlu0 %v73, 92
    %v381 = vpop.permute.xlu0 %380
    %vm382 = vcmask 752640
    %v383 = vsel %vm382, %v375, %v377
    %v384 = vsel %vm382, %v377, %v379
    %v385 = vsel %vm382, %v379, %v381
    %389 = vst [vmem:[#allocation2 + $0x258] sm:$0xff] %v383
    %390 = vst [vmem:[#allocation2 + $0x260] sm:$0xff] %v384
    %391 = vst.msk [vmem:[#allocation2 + $0x268] sm:$0xff] %vm76, %v385
    %392 = vrot.lane.b32.xlu0 %v73, 88
    %v393 = vpop.permute.xlu0 %392
    %v394 = vsel %vm165, %v164, %v393
    %396 = vst [vmem:[#allocation2 + $0x270] sm:$0xff] %v167
    %397 = vst [vmem:[#allocation2 + $0x278] sm:$0xff] %v168
    %398 = vst.msk [vmem:[#allocation2 + $0x280] sm:$0xff] %vm76, %v394
    %v399 = vld [vmem:[#allocation6] sm:$0xff]
    %v400 = vld [vmem:[#allocation6 + $0x8] sm:$0xff]
    %v401 = vld [vmem:[#allocation6 + $0x10] sm:$0xff]
    %v402 = vld [vmem:[#allocation6 + $0x18] sm:$0xff]
    %v403 = vld [vmem:[#allocation6 + $0x20] sm:$0xff]
    %v404 = vld [vmem:[#allocation6 + $0x28] sm:$0xff]
    %v405 = vld [vmem:[#allocation2] sm:$0xff]
    %v406 = vld [vmem:[#allocation2 + $0x8] sm:$0xff]
    %v407 = vld [vmem:[#allocation2 + $0x10] sm:$0xff]
    %v408 = vld [vmem:[#allocation2 + $0x18] sm:$0xff]
    %v409 = vld [vmem:[#allocation2 + $0x20] sm:$0xff]
    %v410 = vld [vmem:[#allocation2 + $0x28] sm:$0xff]
    %v411 = vld [vmem:[#allocation2 + $0x30] sm:$0xff]
    %v412 = vld [vmem:[#allocation2 + $0x38] sm:$0xff]
    %v413 = vld [vmem:[#allocation2 + $0x40] sm:$0xff]
    %v414 = vld [vmem:[#allocation2 + $0x48] sm:$0xff]
    %v415 = vld [vmem:[#allocation2 + $0x50] sm:$0xff]
    %v416 = vld [vmem:[#allocation2 + $0x58] sm:$0xff]
    %v417 = vld [vmem:[#allocation2 + $0x60] sm:$0xff]
    %v418 = vld [vmem:[#allocation2 + $0x68] sm:$0xff]
    %v419 = vld [vmem:[#allocation2 + $0x70] sm:$0xff]
    %v420 = vld [vmem:[#allocation2 + $0x78] sm:$0xff]
    %v421 = vld [vmem:[#allocation2 + $0x80] sm:$0xff]
    %v422 = vld [vmem:[#allocation2 + $0x88] sm:$0xff]
    %v423 = vld [vmem:[#allocation2 + $0x90] sm:$0xff]
    %v424 = vld [vmem:[#allocation2 + $0x98] sm:$0xff]
    %v425 = vld [vmem:[#allocation2 + $0xa0] sm:$0xff]
    %v426 = vld [vmem:[#allocation2 + $0xa8] sm:$0xff]
    %v427 = vld [vmem:[#allocation2 + $0xb0] sm:$0xff]
    %v428 = vld [vmem:[#allocation2 + $0xb8] sm:$0xff]
    %v429 = vld [vmem:[#allocation2 + $0xc0] sm:$0xff]
    %v430 = vld [vmem:[#allocation2 + $0xc8] sm:$0xff]
    %v431 = vld [vmem:[#allocation2 + $0xd0] sm:$0xff]
    %v432 = vld [vmem:[#allocation2 + $0xd8] sm:$0xff]
    %v433 = vld [vmem:[#allocation2 + $0xe0] sm:$0xff]
    %v434 = vld [vmem:[#allocation2 + $0xe8] sm:$0xff]
    %v435 = vld [vmem:[#allocation2 + $0xf0] sm:$0xff]
    %v436 = vld [vmem:[#allocation2 + $0xf8] sm:$0xff]
    %v437 = vld [vmem:[#allocation2 + $0x100] sm:$0xff]
    %v438 = vld [vmem:[#allocation2 + $0x108] sm:$0xff]
    %v439 = vld [vmem:[#allocation2 + $0x110] sm:$0xff]
    %v440 = vld [vmem:[#allocation2 + $0x118] sm:$0xff]
    %v441 = vld [vmem:[#allocation2 + $0x120] sm:$0xff]
    %v442 = vld [vmem:[#allocation2 + $0x128] sm:$0xff]
    %v443 = vld [vmem:[#allocation2 + $0x130] sm:$0xff]
    %v444 = vld [vmem:[#allocation2 + $0x138] sm:$0xff]
    %v445 = vld [vmem:[#allocation2 + $0x140] sm:$0xff]
    %v446 = vld [vmem:[#allocation2 + $0x148] sm:$0xff]
    %v447 = vld [vmem:[#allocation2 + $0x150] sm:$0xff]
    %v448 = vld [vmem:[#allocation2 + $0x158] sm:$0xff]
    %v449 = vld [vmem:[#allocation2 + $0x160] sm:$0xff]
    %v450 = vld [vmem:[#allocation2 + $0x168] sm:$0xff]
    %v451 = vld [vmem:[#allocation2 + $0x170] sm:$0xff]
    %v452 = vld [vmem:[#allocation2 + $0x178] sm:$0xff]
    %v453 = vld [vmem:[#allocation2 + $0x180] sm:$0xff]
    %v454 = vld [vmem:[#allocation2 + $0x188] sm:$0xff]
    %v455 = vld [vmem:[#allocation2 + $0x190] sm:$0xff]
    %v456 = vld [vmem:[#allocation2 + $0x198] sm:$0xff]
    %v457 = vld [vmem:[#allocation2 + $0x1a0] sm:$0xff]
    %v458 = vld [vmem:[#allocation2 + $0x1a8] sm:$0xff]
    %v459 = vld [vmem:[#allocation2 + $0x1b0] sm:$0xff]
    %v460 = vld [vmem:[#allocation2 + $0x1b8] sm:$0xff]
    %v461 = vld [vmem:[#allocation2 + $0x1c0] sm:$0xff]
    %v462 = vld [vmem:[#allocation2 + $0x1c8] sm:$0xff]
    %v463 = vld [vmem:[#allocation2 + $0x1d0] sm:$0xff]
    %v464 = vld [vmem:[#allocation2 + $0x1d8] sm:$0xff]
    %v465 = vld [vmem:[#allocation2 + $0x1e0] sm:$0xff]
    %v466 = vld [vmem:[#allocation2 + $0x1e8] sm:$0xff]
    %v467 = vld [vmem:[#allocation2 + $0x1f0] sm:$0xff]
    %v468 = vld [vmem:[#allocation2 + $0x1f8] sm:$0xff]
    %v469 = vld [vmem:[#allocation2 + $0x200] sm:$0xff]
    %v470 = vld [vmem:[#allocation2 + $0x208] sm:$0xff]
    %v471 = vld [vmem:[#allocation2 + $0x210] sm:$0xff]
    %v472 = vld [vmem:[#allocation2 + $0x218] sm:$0xff]
    %v473 = vld [vmem:[#allocation2 + $0x220] sm:$0xff]
    %v474 = vld [vmem:[#allocation2 + $0x228] sm:$0xff]
    %v475 = vld [vmem:[#allocation2 + $0x230] sm:$0xff]
    %v476 = vld [vmem:[#allocation2 + $0x238] sm:$0xff]
    %v477 = vld [vmem:[#allocation2 + $0x240] sm:$0xff]
    %v478 = vld [vmem:[#allocation2 + $0x248] sm:$0xff]
    %v479 = vld [vmem:[#allocation2 + $0x250] sm:$0xff]
    %v480 = vld [vmem:[#allocation2 + $0x258] sm:$0xff]
    %v481 = vld [vmem:[#allocation2 + $0x260] sm:$0xff]
    %v482 = vld [vmem:[#allocation2 + $0x268] sm:$0xff]
    %v483 = vld [vmem:[#allocation2 + $0x270] sm:$0xff]
    %v484 = vld [vmem:[#allocation2 + $0x278] sm:$0xff]
    %v485 = vld [vmem:[#allocation2 + $0x280] sm:$0xff]
    %487 = vset.pattern.permute.xlu0 88
    %488 = vperm.xlu0 %487, %v400
    %v489 = vpop.permute.xlu0 %488
    %492 = vset.pattern.permute.xlu0 88
    %493 = vperm.xlu0 %492, %v402
    %v494 = vpop.permute.xlu0 %493
    %497 = vset.pattern.permute.xlu0 88
    %498 = vperm.xlu0 %497, %v404
    %v499 = vpop.permute.xlu0 %498
    %v501 = vsel %vm165, %v400, 0
    %v503 = vsel %vm165, %v402, 0
    %v505 = vsel %vm165, %v404, 0
    %507 = vmatprep.subr.mxu0 %v451
    %508 = vmatpush1.msra.mxu0 %v450
    %509 = vmatprep.subr.mxu0 %v448
    %510 = vmatpush1.msra.mxu0 %v447
    %511 = vmatprep.subr.mxu0 %v445
    %512 = vmatpush1.msra.mxu0 %v444
    %513 = vmatprep.subr.mxu0 %v442
    %514 = vmatpush1.msra.mxu0 %v441
    %515 = vmatprep.subr.mxu0 %v439
    %516 = vmatpush1.msra.mxu0 %v438
    %517 = vmatprep.subr.mxu0 %v436
    %518 = vmatpush1.msra.mxu0 %v435
    %519 = vmatprep.subr.mxu0 %v433
    %520 = vmatpush1.msra.mxu0 %v432
    %521 = vmatprep.subr.mxu0 %v430
    %522 = vmatpush1.msra.mxu0 %v429
    %523 = vmatprep.subr.mxu0 %v427
    %524 = vmatpush1.msra.mxu0 %v426
    %525 = vmatprep.subr.mxu0 %v424
    %526 = vmatpush1.msra.mxu0 %v423
    %527 = vmatprep.subr.mxu0 %v421
    %528 = vmatpush1.msra.mxu0 %v420
    %529 = vmatprep.subr.mxu0 %v418
    %530 = vmatpush1.msra.mxu0 %v417
    %531 = vmatprep.subr.mxu0 %v415
    %532 = vmatpush1.msra.mxu0 %v414
    %533 = vmatprep.subr.mxu0 %v412
    %534 = vmatpush1.msra.mxu0 %v411
    %535 = vmatprep.subr.mxu0 %v409
    %536 = vmatpush1.msra.mxu0 %v408
    %537 = vmatprep.subr.mxu0 %v406
    %538 = vmatpush1.msra.mxu0 %v405
    %539 = vmatprep.subr.mxu0 0.0
    %540 = vmatpush2.msra.mxu0 0.0
    %541 = vmatprep.subr.mxu0 0.0
    %542 = vmatpush2.msra.mxu0 0.0
    %543 = vmatprep.subr.mxu0 0.0
    %544 = vmatpush2.msra.mxu0 0.0
    %545 = vmatprep.subr.mxu0 0.0
    %546 = vmatpush2.msra.mxu0 0.0
    %547 = vmatprep.subr.mxu0 0.0
    %548 = vmatpush2.msra.mxu0 0.0
    %549 = vmatprep.subr.mxu0 %v484
    %550 = vmatpush2.msra.mxu0 %v483
    %551 = vmatprep.subr.mxu0 %v481
    %552 = vmatpush2.msra.mxu0 %v480
    %553 = vmatprep.subr.mxu0 %v478
    %554 = vmatpush2.msra.mxu0 %v477
    %555 = vmatprep.subr.mxu0 %v475
    %556 = vmatpush2.msra.mxu0 %v474
    %557 = vmatprep.subr.mxu0 %v472
    %558 = vmatpush2.msra.mxu0 %v471
    %559 = vmatprep.subr.mxu0 %v469
    %560 = vmatpush2.msra.mxu0 %v468
    %561 = vmatprep.subr.mxu0 %v466
    %562 = vmatpush2.msra.mxu0 %v465
    %563 = vmatprep.subr.mxu0 %v463
    %564 = vmatpush2.msra.mxu0 %v462
    %565 = vmatprep.subr.mxu0 %v460
    %566 = vmatpush2.msra.mxu0 %v459
    %567 = vmatprep.subr.mxu0 %v457
    %568 = vmatpush2.msra.mxu0 %v456
    %569 = vmatprep.subr.mxu0 %v454
    %570 = vmatpush2.msra.mxu0 %v453
    %571 = vmatprep.mubr.f32.mxu0 %v501
    %572 = vmatmul.mubr.f32.gmra.mxu0 %v399
    %v573 = vpop.f32.mrf.mxu0
    %v574 = vadd.f32 %v489, %v573
    %v575 = vpop.f32.mrf.mxu0
    %v576 = vadd.f32 %v489, %v575
    %577 = vmatprep.mubr.f32.mxu0 %v503
    %578 = vmatmul.mubr.f32.gmra.mxu0 %v401
    %v579 = vpop.f32.mrf.mxu0
    %v580 = vadd.f32 %v494, %v579
    %v581 = vpop.f32.mrf.mxu0
    %v582 = vadd.f32 %v494, %v581
    %583 = vmatprep.mubr.f32.mxu0 %v505
    %584 = vmatmul.mubr.f32.gmra.mxu0 %v403
    %v585 = vpop.f32.mrf.mxu0
    %v586 = vadd.f32 %v499, %v585
    %v587 = vpop.f32.mrf.mxu0
    %v588 = vadd.f32 %v499, %v587
    %589 = vdwg.mxu0
    %590 = vmatprep.subr.mxu0 0.0
    %591 = vmatpush1.msra.mxu0 %v452
    %592 = vmatprep.subr.mxu0 0.0
    %593 = vmatpush1.msra.mxu0 %v449
    %594 = vmatprep.subr.mxu0 0.0
    %595 = vmatpush1.msra.mxu0 %v446
    %596 = vmatprep.subr.mxu0 0.0
    %597 = vmatpush1.msra.mxu0 %v443
    %598 = vmatprep.subr.mxu0 0.0
    %599 = vmatpush1.msra.mxu0 %v440
    %600 = vmatprep.subr.mxu0 0.0
    %601 = vmatpush1.msra.mxu0 %v437
    %602 = vmatprep.subr.mxu0 0.0
    %603 = vmatpush1.msra.mxu0 %v434
    %604 = vmatprep.subr.mxu0 0.0
    %605 = vmatpush1.msra.mxu0 %v431
    %606 = vmatprep.subr.mxu0 0.0
    %607 = vmatpush1.msra.mxu0 %v428
    %608 = vmatprep.subr.mxu0 0.0
    %609 = vmatpush1.msra.mxu0 %v425
    %610 = vmatprep.subr.mxu0 0.0
    %611 = vmatpush1.msra.mxu0 %v422
    %612 = vmatprep.subr.mxu0 0.0
    %613 = vmatpush1.msra.mxu0 %v419
    %614 = vmatprep.subr.mxu0 0.0
    %615 = vmatpush1.msra.mxu0 %v416
    %616 = vmatprep.subr.mxu0 0.0
    %617 = vmatpush1.msra.mxu0 %v413
    %618 = vmatprep.subr.mxu0 0.0
    %619 = vmatpush1.msra.mxu0 %v410
    %620 = vmatprep.subr.mxu0 0.0
    %621 = vmatpush1.msra.mxu0 %v407
    %622 = vmatprep.subr.mxu0 0.0
    %623 = vmatpush2.msra.mxu0 0.0
    %624 = vmatprep.subr.mxu0 0.0
    %625 = vmatpush2.msra.mxu0 0.0
    %626 = vmatprep.subr.mxu0 0.0
    %627 = vmatpush2.msra.mxu0 0.0
    %628 = vmatprep.subr.mxu0 0.0
    %629 = vmatpush2.msra.mxu0 0.0
    %630 = vmatprep.subr.mxu0 0.0
    %631 = vmatpush2.msra.mxu0 0.0
    %632 = vmatprep.subr.mxu0 0.0
    %633 = vmatpush2.msra.mxu0 %v485
    %634 = vmatprep.subr.mxu0 0.0
    %635 = vmatpush2.msra.mxu0 %v482
    %636 = vmatprep.subr.mxu0 0.0
    %637 = vmatpush2.msra.mxu0 %v479
    %638 = vmatprep.subr.mxu0 0.0
    %639 = vmatpush2.msra.mxu0 %v476
    %640 = vmatprep.subr.mxu0 0.0
    %641 = vmatpush2.msra.mxu0 %v473
    %642 = vmatprep.subr.mxu0 0.0
    %643 = vmatpush2.msra.mxu0 %v470
    %644 = vmatprep.subr.mxu0 0.0
    %645 = vmatpush2.msra.mxu0 %v467
    %646 = vmatprep.subr.mxu0 0.0
    %647 = vmatpush2.msra.mxu0 %v464
    %648 = vmatprep.subr.mxu0 0.0
    %649 = vmatpush2.msra.mxu0 %v461
    %650 = vmatprep.subr.mxu0 0.0
    %651 = vmatpush2.msra.mxu0 %v458
    %652 = vmatprep.subr.mxu0 0.0
    %653 = vmatpush2.msra.mxu0 %v455
    %654 = vmatprep.mubr.f32.mxu0 %v501
    %655 = vmatmul.mubr.f32.gmra.mxu0 %v399
    %v656 = vpop.f32.mrf.mxu0
    %v657 = vadd.f32 %v489, %v656
    %v658 = vpop.f32.mrf.mxu0
    %659 = vmatprep.mubr.f32.mxu0 %v503
    %660 = vmatmul.mubr.f32.gmra.mxu0 %v401
    %v661 = vpop.f32.mrf.mxu0
    %v662 = vadd.f32 %v494, %v661
    %v663 = vpop.f32.mrf.mxu0
    %664 = vmatprep.mubr.f32.mxu0 %v505
    %665 = vmatmul.mubr.f32.gmra.mxu0 %v403
    %v666 = vpop.f32.mrf.mxu0
    %v667 = vadd.f32 %v499, %v666
    %v668 = vpop.f32.mrf.mxu0
    %669 = vdwg.mxu0
    %v670 = vmax.f32 %v574, 0.0
    %v671 = vmax.f32 %v576, 0.0
    %v672 = vmax.f32 %v657, 0.0
    %v673 = vmax.f32 %v580, 0.0
    %v674 = vmax.f32 %v582, 0.0
    %v675 = vmax.f32 %v662, 0.0
    %v676 = vmax.f32 %v586, 0.0
    %v677 = vmax.f32 %v588, 0.0
    %v678 = vmax.f32 %v667, 0.0
    %v679 = vld [vmem:[#allocation8] sm:$0xff]
    %v680 = vld [vmem:[#allocation8 + $0x8] sm:$0xff]
    %v681 = vld [vmem:[#allocation8 + $0x10] sm:$0xff]
    %v682 = vld [vmem:[#allocation8 + $0x18] sm:$0xff]
    %v683 = vld [vmem:[#allocation8 + $0x20] sm:$0xff]
    %v684 = vld [vmem:[#allocation8 + $0x28] sm:$0xff]
    %v685 = vld [vmem:[#allocation8 + $0x30] sm:$0xff]
    %v686 = vld [vmem:[#allocation8 + $0x38] sm:$0xff]
    %v687 = vld [vmem:[#allocation8 + $0x40] sm:$0xff]
    %v688 = vld [vmem:[#allocation8 + $0x48] sm:$0xff]
    %v689 = vld [vmem:[#allocation8 + $0x50] sm:$0xff]
    %v690 = vld [vmem:[#allocation8 + $0x58] sm:$0xff]
    %v691 = vld [vmem:[#allocation8 + $0x60] sm:$0xff]
    %v692 = vld [vmem:[#allocation8 + $0x68] sm:$0xff]
    %v693 = vld [vmem:[#allocation8 + $0x70] sm:$0xff]
    %v694 = vld [vmem:[#allocation8 + $0x78] sm:$0xff]
    %v695 = vld [vmem:[#allocation8 + $0x80] sm:$0xff]
    %v696 = vld [vmem:[#allocation8 + $0x88] sm:$0xff]
    %v697 = vld [vmem:[#allocation8 + $0x90] sm:$0xff]
    %v698 = vld [vmem:[#allocation8 + $0x98] sm:$0xff]
    %v699 = vld [vmem:[#allocation8 + $0xa0] sm:$0xff]
    %v700 = vld [vmem:[#allocation8 + $0xa8] sm:$0xff]
    %v701 = vld [vmem:[#allocation8 + $0xb0] sm:$0xff]
    %v702 = vld [vmem:[#allocation8 + $0xb8] sm:$0xff]
    %v703 = vld [vmem:[#allocation8 + $0xc0] sm:$0xff]
    %v704 = vld [vmem:[#allocation8 + $0xc8] sm:$0xff]
    %v705 = vld [vmem:[#allocation8 + $0xd0] sm:$0xff]
    %v706 = vld [vmem:[#allocation8 + $0xd8] sm:$0xff]
    %v707 = vld [vmem:[#allocation8 + $0xe0] sm:$0xff]
    %v708 = vld [vmem:[#allocation8 + $0xe8] sm:$0xff]
    %v709 = vld [vmem:[#allocation8 + $0xf0] sm:$0xff]
    %v710 = vld [vmem:[#allocation8 + $0xf8] sm:$0xff]
    %v711 = vld [vmem:[#allocation8 + $0x100] sm:$0xff]
    %v712 = vld [vmem:[#allocation8 + $0x108] sm:$0xff]
    %v713 = vld [vmem:[#allocation8 + $0x110] sm:$0xff]
    %v714 = vld [vmem:[#allocation8 + $0x118] sm:$0xff]
    %v715 = vld [vmem:[#allocation8 + $0x120] sm:$0xff]
    %v716 = vld [vmem:[#allocation8 + $0x128] sm:$0xff]
    %v717 = vld [vmem:[#allocation8 + $0x130] sm:$0xff]
    %v718 = vld [vmem:[#allocation8 + $0x138] sm:$0xff]
    %v719 = vld [vmem:[#allocation8 + $0x140] sm:$0xff]
    %v720 = vld [vmem:[#allocation8 + $0x148] sm:$0xff]
    %v721 = vld [vmem:[#allocation8 + $0x150] sm:$0xff]
    %v722 = vld [vmem:[#allocation8 + $0x158] sm:$0xff]
    %v723 = vld [vmem:[#allocation8 + $0x160] sm:$0xff]
    %v724 = vunpack.c.l.bf16 %v679
    %v725 = vunpack.c.h.bf16 %v679
    %v726 = vunpack.c.l.bf16 %v680
    %v727 = vunpack.c.h.bf16 %v680
    %v728 = vunpack.c.l.bf16 %v681
    %v729 = vunpack.c.h.bf16 %v681
    %v730 = vunpack.c.l.bf16 %v682
    %v731 = vunpack.c.h.bf16 %v682
    %v732 = vunpack.c.l.bf16 %v683
    %v733 = vunpack.c.h.bf16 %v683
    %v734 = vunpack.c.l.bf16 %v684
    %v735 = vunpack.c.h.bf16 %v684
    %v736 = vunpack.c.l.bf16 %v685
    %v737 = vunpack.c.h.bf16 %v685
    %v738 = vunpack.c.l.bf16 %v686
    %v739 = vunpack.c.h.bf16 %v686
    %v740 = vunpack.c.l.bf16 %v687
    %v741 = vunpack.c.h.bf16 %v687
    %v742 = vunpack.c.l.bf16 %v688
    %v743 = vunpack.c.h.bf16 %v688
    %v744 = vunpack.c.l.bf16 %v689
    %v745 = vunpack.c.h.bf16 %v689
    %v746 = vunpack.c.l.bf16 %v690
    %v747 = vunpack.c.h.bf16 %v690
    %v748 = vunpack.c.l.bf16 %v691
    %v749 = vunpack.c.h.bf16 %v691
    %v750 = vunpack.c.l.bf16 %v692
    %v751 = vunpack.c.h.bf16 %v692
    %v752 = vunpack.c.l.bf16 %v693
    %v753 = vunpack.c.h.bf16 %v693
    %v754 = vunpack.c.l.bf16 %v694
    %v755 = vunpack.c.h.bf16 %v694
    %v756 = vunpack.c.l.bf16 %v695
    %v757 = vunpack.c.h.bf16 %v695
    %v758 = vunpack.c.l.bf16 %v696
    %v759 = vunpack.c.h.bf16 %v696
    %v760 = vunpack.c.l.bf16 %v697
    %v761 = vunpack.c.h.bf16 %v697
    %v762 = vunpack.c.l.bf16 %v698
    %v763 = vunpack.c.h.bf16 %v698
    %v764 = vunpack.c.l.bf16 %v699
    %v765 = vunpack.c.h.bf16 %v699
    %v766 = vunpack.c.l.bf16 %v700
    %v767 = vunpack.c.h.bf16 %v700
    %v768 = vunpack.c.l.bf16 %v701
    %v769 = vunpack.c.h.bf16 %v701
    %v770 = vunpack.c.l.bf16 %v702
    %v771 = vunpack.c.h.bf16 %v702
    %v772 = vunpack.c.l.bf16 %v703
    %v773 = vunpack.c.h.bf16 %v703
    %v774 = vunpack.c.l.bf16 %v704
    %v775 = vunpack.c.h.bf16 %v704
    %v776 = vunpack.c.l.bf16 %v705
    %v777 = vunpack.c.h.bf16 %v705
    %v778 = vunpack.c.l.bf16 %v706
    %v779 = vunpack.c.h.bf16 %v706
    %v780 = vunpack.c.l.bf16 %v707
    %v781 = vunpack.c.h.bf16 %v707
    %v782 = vunpack.c.l.bf16 %v708
    %v783 = vunpack.c.h.bf16 %v708
    %v784 = vunpack.c.l.bf16 %v709
    %v785 = vunpack.c.h.bf16 %v709
    %v786 = vunpack.c.l.bf16 %v710
    %v787 = vunpack.c.h.bf16 %v710
    %v788 = vunpack.c.l.bf16 %v711
    %v789 = vunpack.c.h.bf16 %v711
    %v790 = vunpack.c.l.bf16 %v712
    %v791 = vunpack.c.h.bf16 %v712
    %v792 = vunpack.c.l.bf16 %v713
    %v793 = vunpack.c.h.bf16 %v713
    %v794 = vunpack.c.l.bf16 %v714
    %v795 = vunpack.c.h.bf16 %v714
    %v796 = vunpack.c.l.bf16 %v715
    %v797 = vunpack.c.h.bf16 %v715
    %v798 = vunpack.c.l.bf16 %v716
    %v799 = vunpack.c.h.bf16 %v716
    %v800 = vunpack.c.l.bf16 %v717
    %v801 = vunpack.c.h.bf16 %v717
    %v802 = vunpack.c.l.bf16 %v718
    %v803 = vunpack.c.h.bf16 %v718
    %v804 = vunpack.c.l.bf16 %v719
    %v805 = vunpack.c.h.bf16 %v719
    %v806 = vunpack.c.l.bf16 %v720
    %v807 = vunpack.c.h.bf16 %v720
    %v808 = vunpack.c.l.bf16 %v721
    %v809 = vunpack.c.h.bf16 %v721
    %v810 = vunpack.c.l.bf16 %v722
    %v811 = vunpack.c.h.bf16 %v722
    %v812 = vunpack.c.l.bf16 %v723
    %v813 = vunpack.c.h.bf16 %v723
    %v815 = vsel %vm76, %v672, 0
    %817 = vmatprep.subr.mxu0 %v755
    %818 = vmatpush1.msra.mxu0 %v754
    %819 = vmatprep.subr.mxu0 %v753
    %820 = vmatpush1.msra.mxu0 %v752
    %821 = vmatprep.subr.mxu0 %v751
    %822 = vmatpush1.msra.mxu0 %v750
    %823 = vmatprep.subr.mxu0 %v749
    %824 = vmatpush1.msra.mxu0 %v748
    %825 = vmatprep.subr.mxu0 %v747
    %826 = vmatpush1.msra.mxu0 %v746
    %827 = vmatprep.subr.mxu0 %v745
    %828 = vmatpush1.msra.mxu0 %v744
    %829 = vmatprep.subr.mxu0 %v743
    %830 = vmatpush1.msra.mxu0 %v742
    %831 = vmatprep.subr.mxu0 %v741
    %832 = vmatpush1.msra.mxu0 %v740
    %833 = vmatprep.subr.mxu0 %v739
    %834 = vmatpush1.msra.mxu0 %v738
    %835 = vmatprep.subr.mxu0 %v737
    %836 = vmatpush1.msra.mxu0 %v736
    %837 = vmatprep.subr.mxu0 %v735
    %838 = vmatpush1.msra.mxu0 %v734
    %839 = vmatprep.subr.mxu0 %v733
    %840 = vmatpush1.msra.mxu0 %v732
    %841 = vmatprep.subr.mxu0 %v731
    %842 = vmatpush1.msra.mxu0 %v730
    %843 = vmatprep.subr.mxu0 %v729
    %844 = vmatpush1.msra.mxu0 %v728
    %845 = vmatprep.subr.mxu0 %v727
    %846 = vmatpush1.msra.mxu0 %v726
    %847 = vmatprep.subr.mxu0 %v725
    %848 = vmatpush1.msra.mxu0 %v724
    %849 = vmatprep.subr.mxu0 %v787
    %850 = vmatpush2.msra.mxu0 %v786
    %851 = vmatprep.subr.mxu0 %v785
    %852 = vmatpush2.msra.mxu0 %v784
    %853 = vmatprep.subr.mxu0 %v783
    %854 = vmatpush2.msra.mxu0 %v782
    %855 = vmatprep.subr.mxu0 %v781
    %856 = vmatpush2.msra.mxu0 %v780
    %857 = vmatprep.subr.mxu0 %v779
    %858 = vmatpush2.msra.mxu0 %v778
    %859 = vmatprep.subr.mxu0 %v777
    %860 = vmatpush2.msra.mxu0 %v776
    %861 = vmatprep.subr.mxu0 %v775
    %862 = vmatpush2.msra.mxu0 %v774
    %863 = vmatprep.subr.mxu0 %v773
    %864 = vmatpush2.msra.mxu0 %v772
    %865 = vmatprep.subr.mxu0 %v771
    %866 = vmatpush2.msra.mxu0 %v770
    %867 = vmatprep.subr.mxu0 %v769
    %868 = vmatpush2.msra.mxu0 %v768
    %869 = vmatprep.subr.mxu0 %v767
    %870 = vmatpush2.msra.mxu0 %v766
    %871 = vmatprep.subr.mxu0 %v765
    %872 = vmatpush2.msra.mxu0 %v764
    %873 = vmatprep.subr.mxu0 %v763
    %874 = vmatpush2.msra.mxu0 %v762
    %875 = vmatprep.subr.mxu0 %v761
    %876 = vmatpush2.msra.mxu0 %v760
    %877 = vmatprep.subr.mxu0 %v759
    %878 = vmatpush2.msra.mxu0 %v758
    %879 = vmatprep.subr.mxu0 %v757
    %880 = vmatpush2.msra.mxu0 %v756
    %881 = vmatprep.mubr.f32.mxu0 %v671
    %882 = vmatmul.mubr.f32.gmra.mxu0 %v670
    %v883 = vpop.f32.mrf.mxu0
    %v884 = vadd.f32 0.0, %v883
    %v885 = vpop.f32.mrf.mxu0
    %v886 = vadd.f32 0.0, %v885
    %887 = vdwg.mxu0
    %888 = vmatprep.subr.mxu0 0.0
    %889 = vmatpush1.msra.mxu0 0.0
    %890 = vmatprep.subr.mxu0 0.0
    %891 = vmatpush1.msra.mxu0 0.0
    %892 = vmatprep.subr.mxu0 0.0
    %893 = vmatpush1.msra.mxu0 0.0
    %894 = vmatprep.subr.mxu0 %v813
    %895 = vmatpush1.msra.mxu0 %v812
    %896 = vmatprep.subr.mxu0 %v811
    %897 = vmatpush1.msra.mxu0 %v810
    %898 = vmatprep.subr.mxu0 %v809
    %899 = vmatpush1.msra.mxu0 %v808
    %900 = vmatprep.subr.mxu0 %v807
    %901 = vmatpush1.msra.mxu0 %v806
    %902 = vmatprep.subr.mxu0 %v805
    %903 = vmatpush1.msra.mxu0 %v804
    %904 = vmatprep.subr.mxu0 %v803
    %905 = vmatpush1.msra.mxu0 %v802
    %906 = vmatprep.subr.mxu0 %v801
    %907 = vmatpush1.msra.mxu0 %v800
    %908 = vmatprep.subr.mxu0 %v799
    %909 = vmatpush1.msra.mxu0 %v798
    %910 = vmatprep.subr.mxu0 %v797
    %911 = vmatpush1.msra.mxu0 %v796
    %912 = vmatprep.subr.mxu0 %v795
    %913 = vmatpush1.msra.mxu0 %v794
    %914 = vmatprep.subr.mxu0 %v793
    %915 = vmatpush1.msra.mxu0 %v792
    %916 = vmatprep.subr.mxu0 %v791
    %917 = vmatpush1.msra.mxu0 %v790
    %918 = vmatprep.subr.mxu0 %v789
    %919 = vmatpush1.msra.mxu0 %v788
    %920 = vmatprep.subr.mxu0 0.0
    %921 = vmatpush2.msra.mxu0 0.0
    %922 = vmatprep.subr.mxu0 0.0
    %923 = vmatpush2.msra.mxu0 0.0
    %924 = vmatprep.subr.mxu0 0.0
    %925 = vmatpush2.msra.mxu0 0.0
    %926 = vmatprep.subr.mxu0 0.0
    %927 = vmatpush2.msra.mxu0 0.0
    %928 = vmatprep.subr.mxu0 0.0
    %929 = vmatpush2.msra.mxu0 0.0
    %930 = vmatprep.subr.mxu0 0.0
    %931 = vmatpush2.msra.mxu0 0.0
    %932 = vmatprep.subr.mxu0 0.0
    %933 = vmatpush2.msra.mxu0 0.0
    %934 = vmatprep.subr.mxu0 0.0
    %935 = vmatpush2.msra.mxu0 0.0
    %936 = vmatprep.subr.mxu0 0.0
    %937 = vmatpush2.msra.mxu0 0.0
    %938 = vmatprep.subr.mxu0 0.0
    %939 = vmatpush2.msra.mxu0 0.0
    %940 = vmatprep.subr.mxu0 0.0
    %941 = vmatpush2.msra.mxu0 0.0
    %942 = vmatprep.subr.mxu0 0.0
    %943 = vmatpush2.msra.mxu0 0.0
    %944 = vmatprep.subr.mxu0 0.0
    %945 = vmatpush2.msra.mxu0 0.0
    %946 = vmatprep.subr.mxu0 0.0
    %947 = vmatpush2.msra.mxu0 0.0
    %948 = vmatprep.subr.mxu0 0.0
    %949 = vmatpush2.msra.mxu0 0.0
    %950 = vmatprep.subr.mxu0 0.0
    %951 = vmatpush2.msra.mxu0 0.0
    %952 = vmatprep.mubr.f32.mxu0 0.0
    %953 = vmatmul.mubr.f32.gmra.mxu0 %v815
    %v954 = vpop.f32.mrf.mxu0
    %v955 = vadd.f32 %v884, %v954
    %v956 = vpop.f32.mrf.mxu0
    %v957 = vadd.f32 %v886, %v956
    %958 = vdwg.mxu0
    %s959 = scalar_lea.vmem [#allocation8], 360
    %v960 = vld [vmem:[%s959] sm:$0xff]
    %v961 = vld [vmem:[%s959 + $0x8] sm:$0xff]
    %v962 = vld [vmem:[%s959 + $0x10] sm:$0xff]
    %v963 = vld [vmem:[%s959 + $0x18] sm:$0xff]
    %v964 = vld [vmem:[%s959 + $0x20] sm:$0xff]
    %v965 = vld [vmem:[%s959 + $0x28] sm:$0xff]
    %v966 = vld [vmem:[%s959 + $0x30] sm:$0xff]
    %v967 = vld [vmem:[%s959 + $0x38] sm:$0xff]
    %v968 = vld [vmem:[%s959 + $0x40] sm:$0xff]
    %v969 = vld [vmem:[%s959 + $0x48] sm:$0xff]
    %v970 = vld [vmem:[%s959 + $0x50] sm:$0xff]
    %v971 = vld [vmem:[%s959 + $0x58] sm:$0xff]
    %v972 = vld [vmem:[%s959 + $0x60] sm:$0xff]
    %v973 = vld [vmem:[%s959 + $0x68] sm:$0xff]
    %v974 = vld [vmem:[%s959 + $0x70] sm:$0xff]
    %v975 = vld [vmem:[%s959 + $0x78] sm:$0xff]
    %v976 = vld [vmem:[%s959 + $0x80] sm:$0xff]
    %v977 = vld [vmem:[%s959 + $0x88] sm:$0xff]
    %v978 = vld [vmem:[%s959 + $0x90] sm:$0xff]
    %v979 = vld [vmem:[%s959 + $0x98] sm:$0xff]
    %v980 = vld [vmem:[%s959 + $0xa0] sm:$0xff]
    %v981 = vld [vmem:[%s959 + $0xa8] sm:$0xff]
    %v982 = vld [vmem:[%s959 + $0xb0] sm:$0xff]
    %v983 = vld [vmem:[%s959 + $0xb8] sm:$0xff]
    %v984 = vld [vmem:[%s959 + $0xc0] sm:$0xff]
    %v985 = vld [vmem:[%s959 + $0xc8] sm:$0xff]
    %v986 = vld [vmem:[%s959 + $0xd0] sm:$0xff]
    %v987 = vld [vmem:[%s959 + $0xd8] sm:$0xff]
    %v988 = vld [vmem:[%s959 + $0xe0] sm:$0xff]
    %v989 = vld [vmem:[%s959 + $0xe8] sm:$0xff]
    %v990 = vld [vmem:[%s959 + $0xf0] sm:$0xff]
    %v991 = vld [vmem:[%s959 + $0xf8] sm:$0xff]
    %v992 = vld [vmem:[%s959 + $0x100] sm:$0xff]
    %v993 = vld [vmem:[%s959 + $0x108] sm:$0xff]
    %v994 = vld [vmem:[%s959 + $0x110] sm:$0xff]
    %v995 = vld [vmem:[%s959 + $0x118] sm:$0xff]
    %v996 = vld [vmem:[%s959 + $0x120] sm:$0xff]
    %v997 = vld [vmem:[%s959 + $0x128] sm:$0xff]
    %v998 = vld [vmem:[%s959 + $0x130] sm:$0xff]
    %v999 = vld [vmem:[%s959 + $0x138] sm:$0xff]
    %v1000 = vld [vmem:[%s959 + $0x140] sm:$0xff]
    %v1001 = vld [vmem:[%s959 + $0x148] sm:$0xff]
    %v1002 = vld [vmem:[%s959 + $0x150] sm:$0xff]
    %v1003 = vld [vmem:[%s959 + $0x158] sm:$0xff]
    %v1004 = vld [vmem:[%s959 + $0x160] sm:$0xff]
    %v1005 = vunpack.c.l.bf16 %v960
    %v1006 = vunpack.c.h.bf16 %v960
    %v1007 = vunpack.c.l.bf16 %v961
    %v1008 = vunpack.c.h.bf16 %v961
    %v1009 = vunpack.c.l.bf16 %v962
    %v1010 = vunpack.c.h.bf16 %v962
    %v1011 = vunpack.c.l.bf16 %v963
    %v1012 = vunpack.c.h.bf16 %v963
    %v1013 = vunpack.c.l.bf16 %v964
    %v1014 = vunpack.c.h.bf16 %v964
    %v1015 = vunpack.c.l.bf16 %v965
    %v1016 = vunpack.c.h.bf16 %v965
    %v1017 = vunpack.c.l.bf16 %v966
    %v1018 = vunpack.c.h.bf16 %v966
    %v1019 = vunpack.c.l.bf16 %v967
    %v1020 = vunpack.c.h.bf16 %v967
    %v1021 = vunpack.c.l.bf16 %v968
    %v1022 = vunpack.c.h.bf16 %v968
    %v1023 = vunpack.c.l.bf16 %v969
    %v1024 = vunpack.c.h.bf16 %v969
    %v1025 = vunpack.c.l.bf16 %v970
    %v1026 = vunpack.c.h.bf16 %v970
    %v1027 = vunpack.c.l.bf16 %v971
    %v1028 = vunpack.c.h.bf16 %v971
    %v1029 = vunpack.c.l.bf16 %v972
    %v1030 = vunpack.c.h.bf16 %v972
    %v1031 = vunpack.c.l.bf16 %v973
    %v1032 = vunpack.c.h.bf16 %v973
    %v1033 = vunpack.c.l.bf16 %v974
    %v1034 = vunpack.c.h.bf16 %v974
    %v1035 = vunpack.c.l.bf16 %v975
    %v1036 = vunpack.c.h.bf16 %v975
    %v1037 = vunpack.c.l.bf16 %v976
    %v1038 = vunpack.c.h.bf16 %v976
    %v1039 = vunpack.c.l.bf16 %v977
    %v1040 = vunpack.c.h.bf16 %v977
    %v1041 = vunpack.c.l.bf16 %v978
    %v1042 = vunpack.c.h.bf16 %v978
    %v1043 = vunpack.c.l.bf16 %v979
    %v1044 = vunpack.c.h.bf16 %v979
    %v1045 = vunpack.c.l.bf16 %v980
    %v1046 = vunpack.c.h.bf16 %v980
    %v1047 = vunpack.c.l.bf16 %v981
    %v1048 = vunpack.c.h.bf16 %v981
    %v1049 = vunpack.c.l.bf16 %v982
    %v1050 = vunpack.c.h.bf16 %v982
    %v1051 = vunpack.c.l.bf16 %v983
    %v1052 = vunpack.c.h.bf16 %v983
    %v1053 = vunpack.c.l.bf16 %v984
    %v1054 = vunpack.c.h.bf16 %v984
    %v1055 = vunpack.c.l.bf16 %v985
    %v1056 = vunpack.c.h.bf16 %v985
    %v1057 = vunpack.c.l.bf16 %v986
    %v1058 = vunpack.c.h.bf16 %v986
    %v1059 = vunpack.c.l.bf16 %v987
    %v1060 = vunpack.c.h.bf16 %v987
    %v1061 = vunpack.c.l.bf16 %v988
    %v1062 = vunpack.c.h.bf16 %v988
    %v1063 = vunpack.c.l.bf16 %v989
    %v1064 = vunpack.c.h.bf16 %v989
    %v1065 = vunpack.c.l.bf16 %v990
    %v1066 = vunpack.c.h.bf16 %v990
    %v1067 = vunpack.c.l.bf16 %v991
    %v1068 = vunpack.c.h.bf16 %v991
    %v1069 = vunpack.c.l.bf16 %v992
    %v1070 = vunpack.c.h.bf16 %v992
    %v1071 = vunpack.c.l.bf16 %v993
    %v1072 = vunpack.c.h.bf16 %v993
    %v1073 = vunpack.c.l.bf16 %v994
    %v1074 = vunpack.c.h.bf16 %v994
    %v1075 = vunpack.c.l.bf16 %v995
    %v1076 = vunpack.c.h.bf16 %v995
    %v1077 = vunpack.c.l.bf16 %v996
    %v1078 = vunpack.c.h.bf16 %v996
    %v1079 = vunpack.c.l.bf16 %v997
    %v1080 = vunpack.c.h.bf16 %v997
    %v1081 = vunpack.c.l.bf16 %v998
    %v1082 = vunpack.c.h.bf16 %v998
    %v1083 = vunpack.c.l.bf16 %v999
    %v1084 = vunpack.c.h.bf16 %v999
    %v1085 = vunpack.c.l.bf16 %v1000
    %v1086 = vunpack.c.h.bf16 %v1000
    %v1087 = vunpack.c.l.bf16 %v1001
    %v1088 = vunpack.c.h.bf16 %v1001
    %v1089 = vunpack.c.l.bf16 %v1002
    %v1090 = vunpack.c.h.bf16 %v1002
    %v1091 = vunpack.c.l.bf16 %v1003
    %v1092 = vunpack.c.h.bf16 %v1003
    %v1093 = vunpack.c.l.bf16 %v1004
    %v1094 = vunpack.c.h.bf16 %v1004
    %v1096 = vsel %vm76, %v675, 0
    %1098 = vmatprep.subr.mxu0 %v1036
    %1099 = vmatpush1.msra.mxu0 %v1035
    %1100 = vmatprep.subr.mxu0 %v1034
    %1101 = vmatpush1.msra.mxu0 %v1033
    %1102 = vmatprep.subr.mxu0 %v1032
    %1103 = vmatpush1.msra.mxu0 %v1031
    %1104 = vmatprep.subr.mxu0 %v1030
    %1105 = vmatpush1.msra.mxu0 %v1029
    %1106 = vmatprep.subr.mxu0 %v1028
    %1107 = vmatpush1.msra.mxu0 %v1027
    %1108 = vmatprep.subr.mxu0 %v1026
    %1109 = vmatpush1.msra.mxu0 %v1025
    %1110 = vmatprep.subr.mxu0 %v1024
    %1111 = vmatpush1.msra.mxu0 %v1023
    %1112 = vmatprep.subr.mxu0 %v1022
    %1113 = vmatpush1.msra.mxu0 %v1021
    %1114 = vmatprep.subr.mxu0 %v1020
    %1115 = vmatpush1.msra.mxu0 %v1019
    %1116 = vmatprep.subr.mxu0 %v1018
    %1117 = vmatpush1.msra.mxu0 %v1017
    %1118 = vmatprep.subr.mxu0 %v1016
    %1119 = vmatpush1.msra.mxu0 %v1015
    %1120 = vmatprep.subr.mxu0 %v1014
    %1121 = vmatpush1.msra.mxu0 %v1013
    %1122 = vmatprep.subr.mxu0 %v1012
    %1123 = vmatpush1.msra.mxu0 %v1011
    %1124 = vmatprep.subr.mxu0 %v1010
    %1125 = vmatpush1.msra.mxu0 %v1009
    %1126 = vmatprep.subr.mxu0 %v1008
    %1127 = vmatpush1.msra.mxu0 %v1007
    %1128 = vmatprep.subr.mxu0 %v1006
    %1129 = vmatpush1.msra.mxu0 %v1005
    %1130 = vmatprep.subr.mxu0 %v1068
    %1131 = vmatpush2.msra.mxu0 %v1067
    %1132 = vmatprep.subr.mxu0 %v1066
    %1133 = vmatpush2.msra.mxu0 %v1065
    %1134 = vmatprep.subr.mxu0 %v1064
    %1135 = vmatpush2.msra.mxu0 %v1063
    %1136 = vmatprep.subr.mxu0 %v1062
    %1137 = vmatpush2.msra.mxu0 %v1061
    %1138 = vmatprep.subr.mxu0 %v1060
    %1139 = vmatpush2.msra.mxu0 %v1059
    %1140 = vmatprep.subr.mxu0 %v1058
    %1141 = vmatpush2.msra.mxu0 %v1057
    %1142 = vmatprep.subr.mxu0 %v1056
    %1143 = vmatpush2.msra.mxu0 %v1055
    %1144 = vmatprep.subr.mxu0 %v1054
    %1145 = vmatpush2.msra.mxu0 %v1053
    %1146 = vmatprep.subr.mxu0 %v1052
    %1147 = vmatpush2.msra.mxu0 %v1051
    %1148 = vmatprep.subr.mxu0 %v1050
    %1149 = vmatpush2.msra.mxu0 %v1049
    %1150 = vmatprep.subr.mxu0 %v1048
    %1151 = vmatpush2.msra.mxu0 %v1047
    %1152 = vmatprep.subr.mxu0 %v1046
    %1153 = vmatpush2.msra.mxu0 %v1045
    %1154 = vmatprep.subr.mxu0 %v1044
    %1155 = vmatpush2.msra.mxu0 %v1043
    %1156 = vmatprep.subr.mxu0 %v1042
    %1157 = vmatpush2.msra.mxu0 %v1041
    %1158 = vmatprep.subr.mxu0 %v1040
    %1159 = vmatpush2.msra.mxu0 %v1039
    %1160 = vmatprep.subr.mxu0 %v1038
    %1161 = vmatpush2.msra.mxu0 %v1037
    %1162 = vmatprep.mubr.f32.mxu0 %v674
    %1163 = vmatmul.mubr.f32.gmra.mxu0 %v673
    %v1164 = vpop.f32.mrf.mxu0
    %v1165 = vadd.f32 0.0, %v1164
    %v1166 = vpop.f32.mrf.mxu0
    %v1167 = vadd.f32 0.0, %v1166
    %1168 = vdwg.mxu0
    %1169 = vmatprep.subr.mxu0 0.0
    %1170 = vmatpush1.msra.mxu0 0.0
    %1171 = vmatprep.subr.mxu0 0.0
    %1172 = vmatpush1.msra.mxu0 0.0
    %1173 = vmatprep.subr.mxu0 0.0
    %1174 = vmatpush1.msra.mxu0 0.0
    %1175 = vmatprep.subr.mxu0 %v1094
    %1176 = vmatpush1.msra.mxu0 %v1093
    %1177 = vmatprep.subr.mxu0 %v1092
    %1178 = vmatpush1.msra.mxu0 %v1091
    %1179 = vmatprep.subr.mxu0 %v1090
    %1180 = vmatpush1.msra.mxu0 %v1089
    %1181 = vmatprep.subr.mxu0 %v1088
    %1182 = vmatpush1.msra.mxu0 %v1087
    %1183 = vmatprep.subr.mxu0 %v1086
    %1184 = vmatpush1.msra.mxu0 %v1085
    %1185 = vmatprep.subr.mxu0 %v1084
    %1186 = vmatpush1.msra.mxu0 %v1083
    %1187 = vmatprep.subr.mxu0 %v1082
    %1188 = vmatpush1.msra.mxu0 %v1081
    %1189 = vmatprep.subr.mxu0 %v1080
    %1190 = vmatpush1.msra.mxu0 %v1079
    %1191 = vmatprep.subr.mxu0 %v1078
    %1192 = vmatpush1.msra.mxu0 %v1077
    %1193 = vmatprep.subr.mxu0 %v1076
    %1194 = vmatpush1.msra.mxu0 %v1075
    %1195 = vmatprep.subr.mxu0 %v1074
    %1196 = vmatpush1.msra.mxu0 %v1073
    %1197 = vmatprep.subr.mxu0 %v1072
    %1198 = vmatpush1.msra.mxu0 %v1071
    %1199 = vmatprep.subr.mxu0 %v1070
    %1200 = vmatpush1.msra.mxu0 %v1069
    %1201 = vmatprep.subr.mxu0 0.0
    %1202 = vmatpush2.msra.mxu0 0.0
    %1203 = vmatprep.subr.mxu0 0.0
    %1204 = vmatpush2.msra.mxu0 0.0
    %1205 = vmatprep.subr.mxu0 0.0
    %1206 = vmatpush2.msra.mxu0 0.0
    %1207 = vmatprep.subr.mxu0 0.0
    %1208 = vmatpush2.msra.mxu0 0.0
    %1209 = vmatprep.subr.mxu0 0.0
    %1210 = vmatpush2.msra.mxu0 0.0
    %1211 = vmatprep.subr.mxu0 0.0
    %1212 = vmatpush2.msra.mxu0 0.0
    %1213 = vmatprep.subr.mxu0 0.0
    %1214 = vmatpush2.msra.mxu0 0.0
    %1215 = vmatprep.subr.mxu0 0.0
    %1216 = vmatpush2.msra.mxu0 0.0
    %1217 = vmatprep.subr.mxu0 0.0
    %1218 = vmatpush2.msra.mxu0 0.0
    %1219 = vmatprep.subr.mxu0 0.0
    %1220 = vmatpush2.msra.mxu0 0.0
    %1221 = vmatprep.subr.mxu0 0.0
    %1222 = vmatpush2.msra.mxu0 0.0
    %1223 = vmatprep.subr.mxu0 0.0
    %1224 = vmatpush2.msra.mxu0 0.0
    %1225 = vmatprep.subr.mxu0 0.0
    %1226 = vmatpush2.msra.mxu0 0.0
    %1227 = vmatprep.subr.mxu0 0.0
    %1228 = vmatpush2.msra.mxu0 0.0
    %1229 = vmatprep.subr.mxu0 0.0
    %1230 = vmatpush2.msra.mxu0 0.0
    %1231 = vmatprep.subr.mxu0 0.0
    %1232 = vmatpush2.msra.mxu0 0.0
    %1233 = vmatprep.mubr.f32.mxu0 0.0
    %1234 = vmatmul.mubr.f32.gmra.mxu0 %v1096
    %v1235 = vpop.f32.mrf.mxu0
    %v1236 = vadd.f32 %v1165, %v1235
    %v1237 = vpop.f32.mrf.mxu0
    %v1238 = vadd.f32 %v1167, %v1237
    %1239 = vdwg.mxu0
    %s1240 = scalar_lea.vmem [#allocation8], 720
    %v1241 = vld [vmem:[%s1240] sm:$0xff]
    %v1242 = vld [vmem:[%s1240 + $0x8] sm:$0xff]
    %v1243 = vld [vmem:[%s1240 + $0x10] sm:$0xff]
    %v1244 = vld [vmem:[%s1240 + $0x18] sm:$0xff]
    %v1245 = vld [vmem:[%s1240 + $0x20] sm:$0xff]
    %v1246 = vld [vmem:[%s1240 + $0x28] sm:$0xff]
    %v1247 = vld [vmem:[%s1240 + $0x30] sm:$0xff]
    %v1248 = vld [vmem:[%s1240 + $0x38] sm:$0xff]
    %v1249 = vld [vmem:[%s1240 + $0x40] sm:$0xff]
    %v1250 = vld [vmem:[%s1240 + $0x48] sm:$0xff]
    %v1251 = vld [vmem:[%s1240 + $0x50] sm:$0xff]
    %v1252 = vld [vmem:[%s1240 + $0x58] sm:$0xff]
    %v1253 = vld [vmem:[%s1240 + $0x60] sm:$0xff]
    %v1254 = vld [vmem:[%s1240 + $0x68] sm:$0xff]
    %v1255 = vld [vmem:[%s1240 + $0x70] sm:$0xff]
    %v1256 = vld [vmem:[%s1240 + $0x78] sm:$0xff]
    %v1257 = vld [vmem:[%s1240 + $0x80] sm:$0xff]
    %v1258 = vld [vmem:[%s1240 + $0x88] sm:$0xff]
    %v1259 = vld [vmem:[%s1240 + $0x90] sm:$0xff]
    %v1260 = vld [vmem:[%s1240 + $0x98] sm:$0xff]
    %v1261 = vld [vmem:[%s1240 + $0xa0] sm:$0xff]
    %v1262 = vld [vmem:[%s1240 + $0xa8] sm:$0xff]
    %v1263 = vld [vmem:[%s1240 + $0xb0] sm:$0xff]
    %v1264 = vld [vmem:[%s1240 + $0xb8] sm:$0xff]
    %v1265 = vld [vmem:[%s1240 + $0xc0] sm:$0xff]
    %v1266 = vld [vmem:[%s1240 + $0xc8] sm:$0xff]
    %v1267 = vld [vmem:[%s1240 + $0xd0] sm:$0xff]
    %v1268 = vld [vmem:[%s1240 + $0xd8] sm:$0xff]
    %v1269 = vld [vmem:[%s1240 + $0xe0] sm:$0xff]
    %v1270 = vld [vmem:[%s1240 + $0xe8] sm:$0xff]
    %v1271 = vld [vmem:[%s1240 + $0xf0] sm:$0xff]
    %v1272 = vld [vmem:[%s1240 + $0xf8] sm:$0xff]
    %v1273 = vld [vmem:[%s1240 + $0x100] sm:$0xff]
    %v1274 = vld [vmem:[%s1240 + $0x108] sm:$0xff]
    %v1275 = vld [vmem:[%s1240 + $0x110] sm:$0xff]
    %v1276 = vld [vmem:[%s1240 + $0x118] sm:$0xff]
    %v1277 = vld [vmem:[%s1240 + $0x120] sm:$0xff]
    %v1278 = vld [vmem:[%s1240 + $0x128] sm:$0xff]
    %v1279 = vld [vmem:[%s1240 + $0x130] sm:$0xff]
    %v1280 = vld [vmem:[%s1240 + $0x138] sm:$0xff]
    %v1281 = vld [vmem:[%s1240 + $0x140] sm:$0xff]
    %v1282 = vld [vmem:[%s1240 + $0x148] sm:$0xff]
    %v1283 = vld [vmem:[%s1240 + $0x150] sm:$0xff]
    %v1284 = vld [vmem:[%s1240 + $0x158] sm:$0xff]
    %v1285 = vld [vmem:[%s1240 + $0x160] sm:$0xff]
    %v1286 = vunpack.c.l.bf16 %v1241
    %v1287 = vunpack.c.h.bf16 %v1241
    %v1288 = vunpack.c.l.bf16 %v1242
    %v1289 = vunpack.c.h.bf16 %v1242
    %v1290 = vunpack.c.l.bf16 %v1243
    %v1291 = vunpack.c.h.bf16 %v1243
    %v1292 = vunpack.c.l.bf16 %v1244
    %v1293 = vunpack.c.h.bf16 %v1244
    %v1294 = vunpack.c.l.bf16 %v1245
    %v1295 = vunpack.c.h.bf16 %v1245
    %v1296 = vunpack.c.l.bf16 %v1246
    %v1297 = vunpack.c.h.bf16 %v1246
    %v1298 = vunpack.c.l.bf16 %v1247
    %v1299 = vunpack.c.h.bf16 %v1247
    %v1300 = vunpack.c.l.bf16 %v1248
    %v1301 = vunpack.c.h.bf16 %v1248
    %v1302 = vunpack.c.l.bf16 %v1249
    %v1303 = vunpack.c.h.bf16 %v1249
    %v1304 = vunpack.c.l.bf16 %v1250
    %v1305 = vunpack.c.h.bf16 %v1250
    %v1306 = vunpack.c.l.bf16 %v1251
    %v1307 = vunpack.c.h.bf16 %v1251
    %v1308 = vunpack.c.l.bf16 %v1252
    %v1309 = vunpack.c.h.bf16 %v1252
    %v1310 = vunpack.c.l.bf16 %v1253
    %v1311 = vunpack.c.h.bf16 %v1253
    %v1312 = vunpack.c.l.bf16 %v1254
    %v1313 = vunpack.c.h.bf16 %v1254
    %v1314 = vunpack.c.l.bf16 %v1255
    %v1315 = vunpack.c.h.bf16 %v1255
    %v1316 = vunpack.c.l.bf16 %v1256
    %v1317 = vunpack.c.h.bf16 %v1256
    %v1318 = vunpack.c.l.bf16 %v1257
    %v1319 = vunpack.c.h.bf16 %v1257
    %v1320 = vunpack.c.l.bf16 %v1258
    %v1321 = vunpack.c.h.bf16 %v1258
    %v1322 = vunpack.c.l.bf16 %v1259
    %v1323 = vunpack.c.h.bf16 %v1259
    %v1324 = vunpack.c.l.bf16 %v1260
    %v1325 = vunpack.c.h.bf16 %v1260
    %v1326 = vunpack.c.l.bf16 %v1261
    %v1327 = vunpack.c.h.bf16 %v1261
    %v1328 = vunpack.c.l.bf16 %v1262
    %v1329 = vunpack.c.h.bf16 %v1262
    %v1330 = vunpack.c.l.bf16 %v1263
    %v1331 = vunpack.c.h.bf16 %v1263
    %v1332 = vunpack.c.l.bf16 %v1264
    %v1333 = vunpack.c.h.bf16 %v1264
    %v1334 = vunpack.c.l.bf16 %v1265
    %v1335 = vunpack.c.h.bf16 %v1265
    %v1336 = vunpack.c.l.bf16 %v1266
    %v1337 = vunpack.c.h.bf16 %v1266
    %v1338 = vunpack.c.l.bf16 %v1267
    %v1339 = vunpack.c.h.bf16 %v1267
    %v1340 = vunpack.c.l.bf16 %v1268
    %v1341 = vunpack.c.h.bf16 %v1268
    %v1342 = vunpack.c.l.bf16 %v1269
    %v1343 = vunpack.c.h.bf16 %v1269
    %v1344 = vunpack.c.l.bf16 %v1270
    %v1345 = vunpack.c.h.bf16 %v1270
    %v1346 = vunpack.c.l.bf16 %v1271
    %v1347 = vunpack.c.h.bf16 %v1271
    %v1348 = vunpack.c.l.bf16 %v1272
    %v1349 = vunpack.c.h.bf16 %v1272
    %v1350 = vunpack.c.l.bf16 %v1273
    %v1351 = vunpack.c.h.bf16 %v1273
    %v1352 = vunpack.c.l.bf16 %v1274
    %v1353 = vunpack.c.h.bf16 %v1274
    %v1354 = vunpack.c.l.bf16 %v1275
    %v1355 = vunpack.c.h.bf16 %v1275
    %v1356 = vunpack.c.l.bf16 %v1276
    %v1357 = vunpack.c.h.bf16 %v1276
    %v1358 = vunpack.c.l.bf16 %v1277
    %v1359 = vunpack.c.h.bf16 %v1277
    %v1360 = vunpack.c.l.bf16 %v1278
    %v1361 = vunpack.c.h.bf16 %v1278
    %v1362 = vunpack.c.l.bf16 %v1279
    %v1363 = vunpack.c.h.bf16 %v1279
    %v1364 = vunpack.c.l.bf16 %v1280
    %v1365 = vunpack.c.h.bf16 %v1280
    %v1366 = vunpack.c.l.bf16 %v1281
    %v1367 = vunpack.c.h.bf16 %v1281
    %v1368 = vunpack.c.l.bf16 %v1282
    %v1369 = vunpack.c.h.bf16 %v1282
    %v1370 = vunpack.c.l.bf16 %v1283
    %v1371 = vunpack.c.h.bf16 %v1283
    %v1372 = vunpack.c.l.bf16 %v1284
    %v1373 = vunpack.c.h.bf16 %v1284
    %v1374 = vunpack.c.l.bf16 %v1285
    %v1375 = vunpack.c.h.bf16 %v1285
    %v1377 = vsel %vm76, %v678, 0
    %1379 = vmatprep.subr.mxu0 %v1317
    %1380 = vmatpush1.msra.mxu0 %v1316
    %1381 = vmatprep.subr.mxu0 %v1315
    %1382 = vmatpush1.msra.mxu0 %v1314
    %1383 = vmatprep.subr.mxu0 %v1313
    %1384 = vmatpush1.msra.mxu0 %v1312
    %1385 = vmatprep.subr.mxu0 %v1311
    %1386 = vmatpush1.msra.mxu0 %v1310
    %1387 = vmatprep.subr.mxu0 %v1309
    %1388 = vmatpush1.msra.mxu0 %v1308
    %1389 = vmatprep.subr.mxu0 %v1307
    %1390 = vmatpush1.msra.mxu0 %v1306
    %1391 = vmatprep.subr.mxu0 %v1305
    %1392 = vmatpush1.msra.mxu0 %v1304
    %1393 = vmatprep.subr.mxu0 %v1303
    %1394 = vmatpush1.msra.mxu0 %v1302
    %1395 = vmatprep.subr.mxu0 %v1301
    %1396 = vmatpush1.msra.mxu0 %v1300
    %1397 = vmatprep.subr.mxu0 %v1299
    %1398 = vmatpush1.msra.mxu0 %v1298
    %1399 = vmatprep.subr.mxu0 %v1297
    %1400 = vmatpush1.msra.mxu0 %v1296
    %1401 = vmatprep.subr.mxu0 %v1295
    %1402 = vmatpush1.msra.mxu0 %v1294
    %1403 = vmatprep.subr.mxu0 %v1293
    %1404 = vmatpush1.msra.mxu0 %v1292
    %1405 = vmatprep.subr.mxu0 %v1291
    %1406 = vmatpush1.msra.mxu0 %v1290
    %1407 = vmatprep.subr.mxu0 %v1289
    %1408 = vmatpush1.msra.mxu0 %v1288
    %1409 = vmatprep.subr.mxu0 %v1287
    %1410 = vmatpush1.msra.mxu0 %v1286
    %1411 = vmatprep.subr.mxu0 %v1349
    %1412 = vmatpush2.msra.mxu0 %v1348
    %1413 = vmatprep.subr.mxu0 %v1347
    %1414 = vmatpush2.msra.mxu0 %v1346
    %1415 = vmatprep.subr.mxu0 %v1345
    %1416 = vmatpush2.msra.mxu0 %v1344
    %1417 = vmatprep.subr.mxu0 %v1343
    %1418 = vmatpush2.msra.mxu0 %v1342
    %1419 = vmatprep.subr.mxu0 %v1341
    %1420 = vmatpush2.msra.mxu0 %v1340
    %1421 = vmatprep.subr.mxu0 %v1339
    %1422 = vmatpush2.msra.mxu0 %v1338
    %1423 = vmatprep.subr.mxu0 %v1337
    %1424 = vmatpush2.msra.mxu0 %v1336
    %1425 = vmatprep.subr.mxu0 %v1335
    %1426 = vmatpush2.msra.mxu0 %v1334
    %1427 = vmatprep.subr.mxu0 %v1333
    %1428 = vmatpush2.msra.mxu0 %v1332
    %1429 = vmatprep.subr.mxu0 %v1331
    %1430 = vmatpush2.msra.mxu0 %v1330
    %1431 = vmatprep.subr.mxu0 %v1329
    %1432 = vmatpush2.msra.mxu0 %v1328
    %1433 = vmatprep.subr.mxu0 %v1327
    %1434 = vmatpush2.msra.mxu0 %v1326
    %1435 = vmatprep.subr.mxu0 %v1325
    %1436 = vmatpush2.msra.mxu0 %v1324
    %1437 = vmatprep.subr.mxu0 %v1323
    %1438 = vmatpush2.msra.mxu0 %v1322
    %1439 = vmatprep.subr.mxu0 %v1321
    %1440 = vmatpush2.msra.mxu0 %v1320
    %1441 = vmatprep.subr.mxu0 %v1319
    %1442 = vmatpush2.msra.mxu0 %v1318
    %1443 = vmatprep.mubr.f32.mxu0 %v677
    %1444 = vmatmul.mubr.f32.gmra.mxu0 %v676
    %v1445 = vpop.f32.mrf.mxu0
    %v1446 = vadd.f32 0.0, %v1445
    %v1447 = vpop.f32.mrf.mxu0
    %v1448 = vadd.f32 0.0, %v1447
    %1449 = vdwg.mxu0
    %1450 = vmatprep.subr.mxu0 0.0
    %1451 = vmatpush1.msra.mxu0 0.0
    %1452 = vmatprep.subr.mxu0 0.0
    %1453 = vmatpush1.msra.mxu0 0.0
    %1454 = vmatprep.subr.mxu0 0.0
    %1455 = vmatpush1.msra.mxu0 0.0
    %1456 = vmatprep.subr.mxu0 %v1375
    %1457 = vmatpush1.msra.mxu0 %v1374
    %1458 = vmatprep.subr.mxu0 %v1373
    %1459 = vmatpush1.msra.mxu0 %v1372
    %1460 = vmatprep.subr.mxu0 %v1371
    %1461 = vmatpush1.msra.mxu0 %v1370
    %1462 = vmatprep.subr.mxu0 %v1369
    %1463 = vmatpush1.msra.mxu0 %v1368
    %1464 = vmatprep.subr.mxu0 %v1367
    %1465 = vmatpush1.msra.mxu0 %v1366
    %1466 = vmatprep.subr.mxu0 %v1365
    %1467 = vmatpush1.msra.mxu0 %v1364
    %1468 = vmatprep.subr.mxu0 %v1363
    %1469 = vmatpush1.msra.mxu0 %v1362
    %1470 = vmatprep.subr.mxu0 %v1361
    %1471 = vmatpush1.msra.mxu0 %v1360
    %1472 = vmatprep.subr.mxu0 %v1359
    %1473 = vmatpush1.msra.mxu0 %v1358
    %1474 = vmatprep.subr.mxu0 %v1357
    %1475 = vmatpush1.msra.mxu0 %v1356
    %1476 = vmatprep.subr.mxu0 %v1355
    %1477 = vmatpush1.msra.mxu0 %v1354
    %1478 = vmatprep.subr.mxu0 %v1353
    %1479 = vmatpush1.msra.mxu0 %v1352
    %1480 = vmatprep.subr.mxu0 %v1351
    %1481 = vmatpush1.msra.mxu0 %v1350
    %1482 = vmatprep.subr.mxu0 0.0
    %1483 = vmatpush2.msra.mxu0 0.0
    %1484 = vmatprep.subr.mxu0 0.0
    %1485 = vmatpush2.msra.mxu0 0.0
    %1486 = vmatprep.subr.mxu0 0.0
    %1487 = vmatpush2.msra.mxu0 0.0
    %1488 = vmatprep.subr.mxu0 0.0
    %1489 = vmatpush2.msra.mxu0 0.0
    %1490 = vmatprep.subr.mxu0 0.0
    %1491 = vmatpush2.msra.mxu0 0.0
    %1492 = vmatprep.subr.mxu0 0.0
    %1493 = vmatpush2.msra.mxu0 0.0
    %1494 = vmatprep.subr.mxu0 0.0
    %1495 = vmatpush2.msra.mxu0 0.0
    %1496 = vmatprep.subr.mxu0 0.0
    %1497 = vmatpush2.msra.mxu0 0.0
    %1498 = vmatprep.subr.mxu0 0.0
    %1499 = vmatpush2.msra.mxu0 0.0
    %1500 = vmatprep.subr.mxu0 0.0
    %1501 = vmatpush2.msra.mxu0 0.0
    %1502 = vmatprep.subr.mxu0 0.0
    %1503 = vmatpush2.msra.mxu0 0.0
    %1504 = vmatprep.subr.mxu0 0.0
    %1505 = vmatpush2.msra.mxu0 0.0
    %1506 = vmatprep.subr.mxu0 0.0
    %1507 = vmatpush2.msra.mxu0 0.0
    %1508 = vmatprep.subr.mxu0 0.0
    %1509 = vmatpush2.msra.mxu0 0.0
    %1510 = vmatprep.subr.mxu0 0.0
    %1511 = vmatpush2.msra.mxu0 0.0
    %1512 = vmatprep.subr.mxu0 0.0
    %1513 = vmatpush2.msra.mxu0 0.0
    %1514 = vmatprep.mubr.f32.mxu0 0.0
    %1515 = vmatmul.mubr.f32.gmra.mxu0 %v1377
    %v1516 = vpop.f32.mrf.mxu0
    %v1517 = vadd.f32 %v1446, %v1516
    %v1518 = vpop.f32.mrf.mxu0
    %v1519 = vadd.f32 %v1448, %v1518
    %1520 = vdwg.mxu0
    %v1521 = vld [vmem:[#allocation9] sm:$0xff]
    %1523 = vset.pattern.permute.xlu0 24
    %1524 = vperm.xlu0 %1523, %v1521
    %v1525 = vpop.permute.xlu0 %1524
    %vm1527 = vcmask 195584
    %v1528 = vsel %vm1527, %v1521, 0
    %1530 = vmatprep.subr.mxu0 0.0
    %1531 = vmatpush1.msra.mxu0 0.0
    %1532 = vmatprep.subr.mxu0 0.0
    %1533 = vmatpush1.msra.mxu0 0.0
    %1534 = vmatprep.subr.mxu0 0.0
    %1535 = vmatpush1.msra.mxu0 0.0
    %1536 = vmatprep.subr.mxu0 0.0
    %1537 = vmatpush1.msra.mxu0 0.0
    %1538 = vmatprep.subr.mxu0 0.0
    %1539 = vmatpush1.msra.mxu0 0.0
    %1540 = vmatprep.subr.mxu0 0.0
    %1541 = vmatpush1.msra.mxu0 0.0
    %1542 = vmatprep.subr.mxu0 0.0
    %1543 = vmatpush1.msra.mxu0 0.0
    %1544 = vmatprep.subr.mxu0 0.0
    %1545 = vmatpush1.msra.mxu0 0.0
    %1546 = vmatprep.subr.mxu0 0.0
    %1547 = vmatpush1.msra.mxu0 0.0
    %1548 = vmatprep.subr.mxu0 0.0
    %1549 = vmatpush1.msra.mxu0 0.0
    %1550 = vmatprep.subr.mxu0 0.0
    %1551 = vmatpush1.msra.mxu0 0.0
    %1552 = vmatprep.subr.mxu0 0.0
    %1553 = vmatpush1.msra.mxu0 0.0
    %1554 = vmatprep.subr.mxu0 0.0
    %1555 = vmatpush1.msra.mxu0 0.0
    %1556 = vmatprep.subr.mxu0 %v1519
    %1557 = vmatpush1.msra.mxu0 %v1517
    %1558 = vmatprep.subr.mxu0 %v1238
    %1559 = vmatpush1.msra.mxu0 %v1236
    %1560 = vmatprep.subr.mxu0 %v957
    %1561 = vmatpush1.msra.mxu0 %v955
    %1562 = vmatprep.subr.mxu0 0.0
    %1563 = vmatpush2.msra.mxu0 0.0
    %1564 = vmatprep.subr.mxu0 0.0
    %1565 = vmatpush2.msra.mxu0 0.0
    %1566 = vmatprep.subr.mxu0 0.0
    %1567 = vmatpush2.msra.mxu0 0.0
    %1568 = vmatprep.subr.mxu0 0.0
    %1569 = vmatpush2.msra.mxu0 0.0
    %1570 = vmatprep.subr.mxu0 0.0
    %1571 = vmatpush2.msra.mxu0 0.0
    %1572 = vmatprep.subr.mxu0 0.0
    %1573 = vmatpush2.msra.mxu0 0.0
    %1574 = vmatprep.subr.mxu0 0.0
    %1575 = vmatpush2.msra.mxu0 0.0
    %1576 = vmatprep.subr.mxu0 0.0
    %1577 = vmatpush2.msra.mxu0 0.0
    %1578 = vmatprep.subr.mxu0 0.0
    %1579 = vmatpush2.msra.mxu0 0.0
    %1580 = vmatprep.subr.mxu0 0.0
    %1581 = vmatpush2.msra.mxu0 0.0
    %1582 = vmatprep.subr.mxu0 0.0
    %1583 = vmatpush2.msra.mxu0 0.0
    %1584 = vmatprep.subr.mxu0 0.0
    %1585 = vmatpush2.msra.mxu0 0.0
    %1586 = vmatprep.subr.mxu0 0.0
    %1587 = vmatpush2.msra.mxu0 0.0
    %1588 = vmatprep.subr.mxu0 0.0
    %1589 = vmatpush2.msra.mxu0 0.0
    %1590 = vmatprep.subr.mxu0 0.0
    %1591 = vmatpush2.msra.mxu0 0.0
    %1592 = vmatprep.subr.mxu0 0.0
    %1593 = vmatpush2.msra.mxu0 0.0
    %1594 = vmatprep.mubr.f32.mxu0 0.0
    %1595 = vmatmul.mubr.f32.gmra.mxu0 %v1528
    %v1596 = vpop.f32.mrf.mxu0
    %v1597 = vadd.f32 %v1525, %v1596
    %v1598 = vpop.f32.mrf.mxu0
    %v1599 = vadd.f32 %v1525, %v1598
    %1600 = vdwg.mxu0
    %1601 = vst [vmem:[#allocation11] sm:$0xff] %v1597
    %1602 = vst [vmem:[#allocation11 + $0x8] sm:$0xff] %v1599
    // Predicated region
    $region34: #{tpu_custom_call.1} parent=1 // pred_check
      _
    $region35: #{tpu_custom_call.1} parent=1 // pred_check_branch
      %1604 = sbr.rel (0) target = $region37
    $region36: #{tpu_custom_call.1} parent=1 // pred_region
      %s1606 = ssub.s32 256, 256
      %1607 = vsyncadd [#allocation5], %s1606
      %s1609 = sshll.u32 [#allocation11], 4
      %s1610 = int_to_ptr.vmem [resolvable:$true] %s1609
      %1612 = dma.vmem_to_hbm [thread:$0]  %s1610, 256, %s4, [#allocation5]
    $region37: #{tpu_custom_call.1} parent=1 // pred_fallthru
      _
    // Predicated region
    $region38: #{tpu_custom_call.1} parent=1 // pred_check
      _
    $region39: #{tpu_custom_call.1} parent=1 // pred_check_branch
      %1614 = sbr.rel (0) target = $region41
    $region40: #{tpu_custom_call.1} parent=1 // pred_region
      %1615 = dma.done [#allocation5], 256
    $region41: #{tpu_custom_call.1} parent=1 // pred_fallthru
      _
    %1616 = vsyncpa [#allocation4], 1
    %1617 = vsyncpa [#allocation7], 1
    %1618 = vsyncpa [#allocation10], 1
    %1619 = vsyncpa [#allocation5], 1

</llo_original>
